<compile_context>
chip_gen: v5e
topology: v5e:2x2
jax: 0.10.0
libtpu: 0.0.40
codegen_flags: <defaults>
</compile_context>

<pallas_src>
import jax
import jax.numpy as jnp
from jax.experimental import pallas as pl
from jax.experimental.pallas import tpu as pltpu


def contrast_block_kernel(v1_ref, v2_ref,
                          w1_ref, b1_ref, w2_ref, b2_ref, g_ref, bt_ref,
                          out_ref):
    """One (TM, C) row tile of ContrastBlock."""
    v1 = v1_ref[...]                                   # (TM, C) fp32 (kept for the gate)
    v2 = v2_ref[...]                                   # (TM, C) bf16

    # Elementwise contrast product directly in bf16 (feeds the MXU).
    v = v1.astype(jnp.bfloat16) * v2                   # (TM, C) bf16

    # conv1 (k=1) + ReLU : bf16 operands, fp32 MXU accumulate
    h = jnp.dot(v, w1_ref[...],
                preferred_element_type=jnp.float32) + b1_ref[...]
    h = jnp.maximum(h, 0.0)                            # (TM, C//beta)

    # conv2 (k=1)
    u = jnp.dot(h.astype(jnp.bfloat16), w2_ref[...],
                preferred_element_type=jnp.float32) + b2_ref[...]   # (TM, C)

    # LayerNorm over channels, eps=1e-6.  One-pass variance (mean(u^2) - mu^2)
    # keeps fewer live (TM, C) fp32 temporaries; rsqrt instead of sqrt+div.
    mu = jnp.mean(u, axis=-1, keepdims=True)
    var = jnp.mean(u * u, axis=-1, keepdims=True) - mu * mu
    var = jnp.maximum(var, 0.0)                        # guard tiny negative cancellation
    un = (u - mu) * jax.lax.rsqrt(var + 1e-6)

    s = jax.nn.sigmoid(un * g_ref[...] + bt_ref[...])  # EUP sigmoid (free slot)
    out_ref[...] = (s * v1).astype(out_ref.dtype)      # gate * original v_1 (fp32)


_PARAM_ORDER = ('w1', 'b1', 'w2', 'b2', 'gamma', 'beta')


def contrast_block_forward(v1, v2, params, *, tm=1024,
                           vmem_tile_budget=40 * 1024 * 1024):
    """ContrastBlock forward.  v1, v2: (B, L, C) fp32 -> (B, L, C) fp32."""
    B, L, C = v1.shape
    ch = params['w1'].shape[1]
    rows = B * L

    x1 = v1.reshape(rows, C)                           # fp32 (gate input/output)
    x2 = v2.reshape(rows, C).astype(jnp.bfloat16)      # bf16 HBM input: less DMA traffic

    # ---- row-tile size ----------------------------------------------------
    # Per-row VMEM bytes: 2x double-buffered (v1 f32 + v2 bf16 + out f32) row
    # tiles + ~4 fp32 (TM, C) in-kernel temporaries + the (TM, ch) hidden tile.
    per_row_bytes = 2 * (4 + 2 + 4) * C + 4 * 4 * C + 4 * ch
    tm_cap = max(16, (vmem_tile_budget // per_row_bytes) // 16 * 16)
    tm_eff = min(tm, tm_cap, rows)
    if tm_eff < rows:
        # bf16 input -> keep the sublane (row) dim a multiple of 16.
        tm_eff = max(16, (tm_eff // 16) * 16)
    # v7x megacore: keep >= 2 grid steps whenever rows allow so both
    # TensorCores get work (harmless on single-core v5e/v6e).
    if tm_eff == rows and rows >= 32:
        tm_eff = max(16, (rows // 2 // 16) * 16)

    # Ragged last block (rows % tm_eff != 0) is safe: every row is independent,
    # OOB reads only pollute garbage rows and OOB writes are masked.  No jnp.pad
    # (which would cost an extra HBM read+write of both inputs).
    grid = (pl.cdiv(rows, tm_eff),)

    row_spec = pl.BlockSpec((tm_eff, C), lambda i: (i, 0))
    pargs = [params[k] for k in _PARAM_ORDER]

    def build(single_buffer_params):
        def pspec(p):
            n = p.ndim
            idx = lambda i, _n=n: (0,) * _n            # grid-invariant -> single DMA
            if single_buffer_params:
                # Second pipeline buffer is never used for constant params;
                # reclaim it (matters at large C under v7x's 64 MiB VMEM).
                return pl.BlockSpec(p.shape, idx, pipeline_mode=pl.Buffered(1))
            return pl.BlockSpec(p.shape, idx)

        # NOTE: on v7x, once tm is finalized, sweeping pl.Buffered(2) vs (3) on
        # row_spec can hide exposed DMA at tile boundaries (VMEM permitting).
        return pl.pallas_call(
            contrast_block_kernel,
            out_shape=jax.ShapeDtypeStruct((rows, C), jnp.float32),
            grid_spec=pltpu.PrefetchScalarGridSpec(
                num_scalar_prefetch=0,
                grid=grid,
                in_specs=[row_spec, row_spec] + [pspec(p) for p in pargs],
                out_specs=row_spec,
            ),
            compiler_params=pltpu.CompilerParams(
                dimension_semantics=("parallel",),
                vmem_limit_bytes=48 * 1024 * 1024,     # safe on v5e/v6e/v7x
            ),
        )

    try:
        out = build(single_buffer_params=True)(x1, x2, *pargs)
    except Exception:
        # pipeline_mode=pl.Buffered(1) not supported on this JAX version ->
        # fall back to default double-buffered parameter blocks.
        out = build(single_buffer_params=False)(x1, x2, *pargs)

    return out.reshape(B, L, C)


def init_params(key, dim, beta):
    """ContrastBlock parameters.

    Matmul weights are stored bf16 in (C_in, C_out) layout.  Note: a real
    PyTorch Conv1d weight is (C_out, C_in, 1); load it as w[:, :, 0].T.
    """
    ch = dim // beta
    ks = jax.random.split(key, 4)

    def w(k, shape, scale=0.1):
        return (scale * jax.random.normal(k, shape, jnp.float32)).astype(jnp.bfloat16)

    def b(k, shape, scale=0.1):
        return (scale * jax.random.normal(k, shape, jnp.float32)).astype(jnp.float32)

    return dict(
        w1=w(ks[0], (dim, ch)),   b1=b(ks[1], (1, ch)),
        w2=w(ks[2], (ch, dim)),   b2=b(ks[3], (1, dim)),
        gamma=jnp.ones((1, dim), jnp.float32),
        beta=jnp.zeros((1, dim), jnp.float32),
    )


# ----------------------- pure-JAX reference for checking -----------------------
def reference_forward(v1, v2, params):
    # Mirrors the kernel's intentional precision choices (bf16 contrast product
    # and bf16 MXU matmuls with fp32 accumulation); LN uses two-pass variance.
    p = params
    v = v1.astype(jnp.bfloat16) * v2.astype(jnp.bfloat16)
    h = jax.nn.relu(
        jnp.einsum('blc,cd->bld', v, p['w1'],
                   preferred_element_type=jnp.float32) + p['b1'])
    u = jnp.einsum('bld,dc->blc', h.astype(jnp.bfloat16), p['w2'],
                   preferred_element_type=jnp.float32) + p['b2']
    mu = u.mean(-1, keepdims=True)
    var = ((u - mu) ** 2).mean(-1, keepdims=True)
    un = (u - mu) * jax.lax.rsqrt(var + 1e-6)
    return jax.nn.sigmoid(un * p['gamma'] + p['beta']) * v1


if __name__ == "__main__":
    B, L, C, beta = 2, 64, 128, 4          # small, lane-dense shapes
    key = jax.random.PRNGKey(0)
    k1, k2, kp = jax.random.split(key, 3)

    v1 = jax.random.normal(k1, (B, L, C), jnp.float32)
    v2 = jax.random.normal(k2, (B, L, C), jnp.float32)
    params = init_params(kp, C, beta)

    # rows=128 -> tm_eff auto-halves to 64 so the parallel grid has 2 steps.
    out = contrast_block_forward(v1, v2, params)
    out = jax.block_until_ready(out)
    assert out.shape == (B, L, C), out.shape

    ref = reference_forward(v1, v2, params)
    err = float(jnp.max(jnp.abs(out - ref)))
    assert jnp.allclose(out, ref, rtol=2e-3, atol=2e-3), err

    print("KERNEL_OK")
</pallas_src>

<mosaic_0001>
module attributes {stable_mosaic.version = 11 : i64} {
  func.func @contrast_block_kernel(%arg0: i32, %arg1: memref<64x128xf32, #tpu.memory_space<vmem>>, %arg2: memref<64x128xbf16, #tpu.memory_space<vmem>>, %arg3: memref<128x32xbf16, #tpu.memory_space<vmem>>, %arg4: memref<1x32xf32, #tpu.memory_space<vmem>>, %arg5: memref<32x128xbf16, #tpu.memory_space<vmem>>, %arg6: memref<1x128xf32, #tpu.memory_space<vmem>>, %arg7: memref<1x128xf32, #tpu.memory_space<vmem>>, %arg8: memref<1x128xf32, #tpu.memory_space<vmem>>, %arg9: memref<64x128xf32, #tpu.memory_space<vmem>>) attributes {dimension_semantics = [#tpu.dimension_semantics<parallel>], iteration_bounds = array<i64: 2>, scalar_prefetch = 0 : i64, scratch_operands = 0 : i64, tpu.core_type = #tpu.core_type<tc>, window_params = [{transform_indices = @transform_0, window_bounds = array<i64: 64, 128>}, {transform_indices = @transform_1, window_bounds = array<i64: 64, 128>}, {pipeline_mode = #tpu.pipeline_mode<synchronous>, transform_indices = @transform_2, window_bounds = array<i64: 128, 32>}, {pipeline_mode = #tpu.pipeline_mode<synchronous>, transform_indices = @transform_3, window_bounds = array<i64: 1, 32>}, {pipeline_mode = #tpu.pipeline_mode<synchronous>, transform_indices = @transform_4, window_bounds = array<i64: 32, 128>}, {pipeline_mode = #tpu.pipeline_mode<synchronous>, transform_indices = @transform_5, window_bounds = array<i64: 1, 128>}, {pipeline_mode = #tpu.pipeline_mode<synchronous>, transform_indices = @transform_6, window_bounds = array<i64: 1, 128>}, {pipeline_mode = #tpu.pipeline_mode<synchronous>, transform_indices = @transform_7, window_bounds = array<i64: 1, 128>}, {transform_indices = @transform_8, window_bounds = array<i64: 64, 128>}]} {
    %c0 = arith.constant 0 : index
    %c0_0 = arith.constant 0 : index
    %0 = vector.load %arg1[%c0, %c0_0] : memref<64x128xf32, #tpu.memory_space<vmem>>, vector<64x128xf32>
    %c0_1 = arith.constant 0 : index
    %c0_2 = arith.constant 0 : index
    %1 = vector.load %arg2[%c0_1, %c0_2] : memref<64x128xbf16, #tpu.memory_space<vmem>>, vector<64x128xbf16>
    %2 = arith.truncf %0 : vector<64x128xf32> to vector<64x128xbf16>
    %3 = arith.mulf %2, %1 : vector<64x128xbf16>
    %c0_3 = arith.constant 0 : index
    %c0_4 = arith.constant 0 : index
    %4 = vector.load %arg3[%c0_3, %c0_4] : memref<128x32xbf16, #tpu.memory_space<vmem>>, vector<128x32xbf16>
    %cst = arith.constant dense<0.000000e+00> : vector<64x32xf32>
    %5 = tpu.matmul %3, %4, %cst {dimension_numbers = #tpu.dot_dimension_numbers<[1], [0], [0], [1], [0, 0, 1, 1], [], []>} : vector<64x128xbf16>, vector<128x32xbf16>, vector<64x32xf32> -> vector<64x32xf32>
    %c0_5 = arith.constant 0 : index
    %c0_6 = arith.constant 0 : index
    %6 = vector.load %arg4[%c0_5, %c0_6] : memref<1x32xf32, #tpu.memory_space<vmem>>, vector<1x32xf32>
    %7 = vector.broadcast %6 : vector<1x32xf32> to vector<64x32xf32>
    %8 = arith.addf %5, %7 : vector<64x32xf32>
    %cst_7 = arith.constant 0.000000e+00 : f32
    %9 = vector.broadcast %cst_7 : f32 to vector<64x32xf32>
    %10 = arith.maximumf %8, %9 : vector<64x32xf32>
    %11 = arith.truncf %10 : vector<64x32xf32> to vector<64x32xbf16>
    %c0_8 = arith.constant 0 : index
    %c0_9 = arith.constant 0 : index
    %12 = vector.load %arg5[%c0_8, %c0_9] : memref<32x128xbf16, #tpu.memory_space<vmem>>, vector<32x128xbf16>
    %cst_10 = arith.constant dense<0.000000e+00> : vector<64x128xf32>
    %13 = tpu.matmul %11, %12, %cst_10 {dimension_numbers = #tpu.dot_dimension_numbers<[1], [0], [0], [1], [0, 0, 1, 1], [], []>} : vector<64x32xbf16>, vector<32x128xbf16>, vector<64x128xf32> -> vector<64x128xf32>
    %c0_11 = arith.constant 0 : index
    %c0_12 = arith.constant 0 : index
    %14 = vector.load %arg6[%c0_11, %c0_12] : memref<1x128xf32, #tpu.memory_space<vmem>>, vector<1x128xf32>
    %15 = vector.broadcast %14 : vector<1x128xf32> to vector<64x128xf32>
    %16 = arith.addf %13, %15 : vector<64x128xf32>
    %cst_13 = arith.constant dense<0.000000e+00> : vector<64xf32>
    %17 = vector.multi_reduction <add>, %16, %cst_13 [1] : vector<64x128xf32> to vector<64xf32>
    %18 = vector.shape_cast %17 : vector<64xf32> to vector<64x1xf32>
    %cst_14 = arith.constant 1.280000e+02 : f32
    %19 = vector.broadcast %cst_14 : f32 to vector<64x1xf32>
    %20 = arith.divf %18, %19 : vector<64x1xf32>
    %21 = arith.mulf %16, %16 : vector<64x128xf32>
    %cst_15 = arith.constant dense<0.000000e+00> : vector<64xf32>
    %22 = vector.multi_reduction <add>, %21, %cst_15 [1] : vector<64x128xf32> to vector<64xf32>
    %23 = vector.shape_cast %22 : vector<64xf32> to vector<64x1xf32>
    %cst_16 = arith.constant 1.280000e+02 : f32
    %24 = vector.broadcast %cst_16 : f32 to vector<64x1xf32>
    %25 = arith.divf %23, %24 : vector<64x1xf32>
    %26 = arith.mulf %20, %20 : vector<64x1xf32>
    %27 = arith.subf %25, %26 : vector<64x1xf32>
    %cst_17 = arith.constant 0.000000e+00 : f32
    %28 = vector.broadcast %cst_17 : f32 to vector<64x1xf32>
    %29 = arith.maximumf %27, %28 : vector<64x1xf32>
    %30 = vector.broadcast %20 : vector<64x1xf32> to vector<64x128xf32>
    %31 = arith.subf %16, %30 : vector<64x128xf32>
    %cst_18 = arith.constant 9.99999997E-7 : f32
    %32 = vector.broadcast %cst_18 : f32 to vector<64x1xf32>
    %33 = arith.addf %29, %32 : vector<64x1xf32>
    %34 = math.rsqrt %33 : vector<64x1xf32>
    %35 = vector.broadcast %34 : vector<64x1xf32> to vector<64x128xf32>
    %36 = arith.mulf %31, %35 : vector<64x128xf32>
    %c0_19 = arith.constant 0 : index
    %c0_20 = arith.constant 0 : index
    %37 = vector.load %arg7[%c0_19, %c0_20] : memref<1x128xf32, #tpu.memory_space<vmem>>, vector<1x128xf32>
    %38 = vector.broadcast %37 : vector<1x128xf32> to vector<64x128xf32>
    %39 = arith.mulf %36, %38 : vector<64x128xf32>
    %c0_21 = arith.constant 0 : index
    %c0_22 = arith.constant 0 : index
    %40 = vector.load %arg8[%c0_21, %c0_22] : memref<1x128xf32, #tpu.memory_space<vmem>>, vector<1x128xf32>
    %41 = vector.broadcast %40 : vector<1x128xf32> to vector<64x128xf32>
    %42 = arith.addf %39, %41 : vector<64x128xf32>
    %43 = arith.negf %42 : vector<64x128xf32>
    %44 = math.exp %43 : vector<64x128xf32>
    %cst_23 = arith.constant 1.000000e+00 : f32
    %45 = vector.broadcast %cst_23 : f32 to vector<64x128xf32>
    %46 = arith.addf %45, %44 : vector<64x128xf32>
    %47 = arith.divf %45, %46 : vector<64x128xf32>
    %48 = arith.mulf %47, %0 : vector<64x128xf32>
    %c0_24 = arith.constant 0 : index
    %c0_25 = arith.constant 0 : index
    %49 = vector.load %arg9[%c0_24, %c0_25] : memref<64x128xf32, #tpu.memory_space<vmem>>, vector<64x128xf32>
    tpu.vector_store %arg9[%c0_24, %c0_25], %48 {strides = array<i32>} : memref<64x128xf32, #tpu.memory_space<vmem>>, vector<64x128xf32>,
    return
  }
  func.func @transform_0(%arg0: i32) -> (i32, i32) {
    %c0_i32 = arith.constant 0 : i32
    %c0_i32_0 = arith.constant 0 : i32
    return %arg0, %c0_i32 : i32, i32
  }
  func.func @transform_1(%arg0: i32) -> (i32, i32) {
    %c0_i32 = arith.constant 0 : i32
    %c0_i32_0 = arith.constant 0 : i32
    return %arg0, %c0_i32 : i32, i32
  }
  func.func @transform_2(%arg0: i32) -> (i32, i32) {
    %c0_i32 = arith.constant 0 : i32
    %c0_i32_0 = arith.constant 0 : i32
    %c0_i32_1 = arith.constant 0 : i32
    return %c0_i32, %c0_i32_0 : i32, i32
  }
  func.func @transform_3(%arg0: i32) -> (i32, i32) {
    %c0_i32 = arith.constant 0 : i32
    %c0_i32_0 = arith.constant 0 : i32
    %c0_i32_1 = arith.constant 0 : i32
    return %c0_i32, %c0_i32_0 : i32, i32
  }
  func.func @transform_4(%arg0: i32) -> (i32, i32) {
    %c0_i32 = arith.constant 0 : i32
    %c0_i32_0 = arith.constant 0 : i32
    %c0_i32_1 = arith.constant 0 : i32
    return %c0_i32, %c0_i32_0 : i32, i32
  }
  func.func @transform_5(%arg0: i32) -> (i32, i32) {
    %c0_i32 = arith.constant 0 : i32
    %c0_i32_0 = arith.constant 0 : i32
    %c0_i32_1 = arith.constant 0 : i32
    return %c0_i32, %c0_i32_0 : i32, i32
  }
  func.func @transform_6(%arg0: i32) -> (i32, i32) {
    %c0_i32 = arith.constant 0 : i32
    %c0_i32_0 = arith.constant 0 : i32
    %c0_i32_1 = arith.constant 0 : i32
    return %c0_i32, %c0_i32_0 : i32, i32
  }
  func.func @transform_7(%arg0: i32) -> (i32, i32) {
    %c0_i32 = arith.constant 0 : i32
    %c0_i32_0 = arith.constant 0 : i32
    %c0_i32_1 = arith.constant 0 : i32
    return %c0_i32, %c0_i32_0 : i32, i32
  }
  func.func @transform_8(%arg0: i32) -> (i32, i32) {
    %c0_i32 = arith.constant 0 : i32
    %c0_i32_0 = arith.constant 0 : i32
    return %arg0, %c0_i32 : i32, i32
  }
}

module attributes {stable_mosaic.version = 11 : i64} {
  func.func @contrast_block_kernel(%arg0: i32, %arg1: memref<64x128xf32, #tpu.memory_space<vmem>>, %arg2: memref<64x128xbf16, #tpu.memory_space<vmem>>, %arg3: memref<128x32xbf16, #tpu.memory_space<vmem>>, %arg4: memref<1x32xf32, #tpu.memory_space<vmem>>, %arg5: memref<32x128xbf16, #tpu.memory_space<vmem>>, %arg6: memref<1x128xf32, #tpu.memory_space<vmem>>, %arg7: memref<1x128xf32, #tpu.memory_space<vmem>>, %arg8: memref<1x128xf32, #tpu.memory_space<vmem>>, %arg9: memref<64x128xf32, #tpu.memory_space<vmem>>) attributes {dimension_semantics = [#tpu.dimension_semantics<parallel>], iteration_bounds = array<i64: 2>, scalar_prefetch = 0 : i64, scratch_operands = 0 : i64, tpu.core_type = #tpu.core_type<tc>, window_params = [{transform_indices = @transform_0, window_bounds = array<i64: 64, 128>}, {transform_indices = @transform_1, window_bounds = array<i64: 64, 128>}, {pipeline_mode = #tpu.pipeline_mode<synchronous>, transform_indices = @transform_2, window_bounds = array<i64: 128, 32>}, {pipeline_mode = #tpu.pipeline_mode<synchronous>, transform_indices = @transform_3, window_bounds = array<i64: 1, 32>}, {pipeline_mode = #tpu.pipeline_mode<synchronous>, transform_indices = @transform_4, window_bounds = array<i64: 32, 128>}, {pipeline_mode = #tpu.pipeline_mode<synchronous>, transform_indices = @transform_5, window_bounds = array<i64: 1, 128>}, {pipeline_mode = #tpu.pipeline_mode<synchronous>, transform_indices = @transform_6, window_bounds = array<i64: 1, 128>}, {pipeline_mode = #tpu.pipeline_mode<synchronous>, transform_indices = @transform_7, window_bounds = array<i64: 1, 128>}, {transform_indices = @transform_8, window_bounds = array<i64: 64, 128>}]} {
    %c0 = arith.constant 0 : index
    %c0_0 = arith.constant 0 : index
    %0 = vector.load %arg1[%c0, %c0_0] : memref<64x128xf32, #tpu.memory_space<vmem>>, vector<64x128xf32>
    %c0_1 = arith.constant 0 : index
    %c0_2 = arith.constant 0 : index
    %1 = vector.load %arg2[%c0_1, %c0_2] : memref<64x128xbf16, #tpu.memory_space<vmem>>, vector<64x128xbf16>
    %2 = arith.truncf %0 : vector<64x128xf32> to vector<64x128xbf16>
    %3 = arith.mulf %2, %1 : vector<64x128xbf16>
    %c0_3 = arith.constant 0 : index
    %c0_4 = arith.constant 0 : index
    %4 = vector.load %arg3[%c0_3, %c0_4] : memref<128x32xbf16, #tpu.memory_space<vmem>>, vector<128x32xbf16>
    %cst = arith.constant dense<0.000000e+00> : vector<64x32xf32>
    %5 = tpu.matmul %3, %4, %cst {dimension_numbers = #tpu.dot_dimension_numbers<[1], [0], [0], [1], [0, 0, 1, 1], [], []>} : vector<64x128xbf16>, vector<128x32xbf16>, vector<64x32xf32> -> vector<64x32xf32>
    %c0_5 = arith.constant 0 : index
    %c0_6 = arith.constant 0 : index
    %6 = vector.load %arg4[%c0_5, %c0_6] : memref<1x32xf32, #tpu.memory_space<vmem>>, vector<1x32xf32>
    %7 = vector.broadcast %6 : vector<1x32xf32> to vector<64x32xf32>
    %8 = arith.addf %5, %7 : vector<64x32xf32>
    %cst_7 = arith.constant 0.000000e+00 : f32
    %9 = vector.broadcast %cst_7 : f32 to vector<64x32xf32>
    %10 = arith.maximumf %8, %9 : vector<64x32xf32>
    %11 = arith.truncf %10 : vector<64x32xf32> to vector<64x32xbf16>
    %c0_8 = arith.constant 0 : index
    %c0_9 = arith.constant 0 : index
    %12 = vector.load %arg5[%c0_8, %c0_9] : memref<32x128xbf16, #tpu.memory_space<vmem>>, vector<32x128xbf16>
    %cst_10 = arith.constant dense<0.000000e+00> : vector<64x128xf32>
    %13 = tpu.matmul %11, %12, %cst_10 {dimension_numbers = #tpu.dot_dimension_numbers<[1], [0], [0], [1], [0, 0, 1, 1], [], []>} : vector<64x32xbf16>, vector<32x128xbf16>, vector<64x128xf32> -> vector<64x128xf32>
    %c0_11 = arith.constant 0 : index
    %c0_12 = arith.constant 0 : index
    %14 = vector.load %arg6[%c0_11, %c0_12] : memref<1x128xf32, #tpu.memory_space<vmem>>, vector<1x128xf32>
    %15 = vector.broadcast %14 : vector<1x128xf32> to vector<64x128xf32>
    %16 = arith.addf %13, %15 : vector<64x128xf32>
    %cst_13 = arith.constant dense<0.000000e+00> : vector<64xf32>
    %17 = vector.multi_reduction <add>, %16, %cst_13 [1] : vector<64x128xf32> to vector<64xf32>
    %18 = vector.shape_cast %17 : vector<64xf32> to vector<64x1xf32>
    %cst_14 = arith.constant 1.280000e+02 : f32
    %19 = vector.broadcast %cst_14 : f32 to vector<64x1xf32>
    %20 = arith.divf %18, %19 : vector<64x1xf32>
    %21 = arith.mulf %16, %16 : vector<64x128xf32>
    %cst_15 = arith.constant dense<0.000000e+00> : vector<64xf32>
    %22 = vector.multi_reduction <add>, %21, %cst_15 [1] : vector<64x128xf32> to vector<64xf32>
    %23 = vector.shape_cast %22 : vector<64xf32> to vector<64x1xf32>
    %cst_16 = arith.constant 1.280000e+02 : f32
    %24 = vector.broadcast %cst_16 : f32 to vector<64x1xf32>
    %25 = arith.divf %23, %24 : vector<64x1xf32>
    %26 = arith.mulf %20, %20 : vector<64x1xf32>
    %27 = arith.subf %25, %26 : vector<64x1xf32>
    %cst_17 = arith.constant 0.000000e+00 : f32
    %28 = vector.broadcast %cst_17 : f32 to vector<64x1xf32>
    %29 = arith.maximumf %27, %28 : vector<64x1xf32>
    %30 = vector.broadcast %20 : vector<64x1xf32> to vector<64x128xf32>
    %31 = arith.subf %16, %30 : vector<64x128xf32>
    %cst_18 = arith.constant 9.99999997E-7 : f32
    %32 = vector.broadcast %cst_18 : f32 to vector<64x1xf32>
    %33 = arith.addf %29, %32 : vector<64x1xf32>
    %34 = math.rsqrt %33 : vector<64x1xf32>
    %35 = vector.broadcast %34 : vector<64x1xf32> to vector<64x128xf32>
    %36 = arith.mulf %31, %35 : vector<64x128xf32>
    %c0_19 = arith.constant 0 : index
    %c0_20 = arith.constant 0 : index
    %37 = vector.load %arg7[%c0_19, %c0_20] : memref<1x128xf32, #tpu.memory_space<vmem>>, vector<1x128xf32>
    %38 = vector.broadcast %37 : vector<1x128xf32> to vector<64x128xf32>
    %39 = arith.mulf %36, %38 : vector<64x128xf32>
    %c0_21 = arith.constant 0 : index
    %c0_22 = arith.constant 0 : index
    %40 = vector.load %arg8[%c0_21, %c0_22] : memref<1x128xf32, #tpu.memory_space<vmem>>, vector<1x128xf32>
    %41 = vector.broadcast %40 : vector<1x128xf32> to vector<64x128xf32>
    %42 = arith.addf %39, %41 : vector<64x128xf32>
    %43 = arith.negf %42 : vector<64x128xf32>
    %44 = math.exp %43 : vector<64x128xf32>
    %cst_23 = arith.constant 1.000000e+00 : f32
    %45 = vector.broadcast %cst_23 : f32 to vector<64x128xf32>
    %46 = arith.addf %45, %44 : vector<64x128xf32>
    %47 = arith.divf %45, %46 : vector<64x128xf32>
    %48 = arith.mulf %47, %0 : vector<64x128xf32>
    %c0_24 = arith.constant 0 : index
    %c0_25 = arith.constant 0 : index
    %49 = vector.load %arg9[%c0_24, %c0_25] : memref<64x128xf32, #tpu.memory_space<vmem>>, vector<64x128xf32>
    tpu.vector_store %arg9[%c0_24, %c0_25], %48 {strides = array<i32>} : memref<64x128xf32, #tpu.memory_space<vmem>>, vector<64x128xf32>,
    return
  }
  func.func @transform_0(%arg0: i32) -> (i32, i32) {
    %c0_i32 = arith.constant 0 : i32
    %c0_i32_0 = arith.constant 0 : i32
    return %arg0, %c0_i32 : i32, i32
  }
  func.func @transform_1(%arg0: i32) -> (i32, i32) {
    %c0_i32 = arith.constant 0 : i32
    %c0_i32_0 = arith.constant 0 : i32
    return %arg0, %c0_i32 : i32, i32
  }
  func.func @transform_2(%arg0: i32) -> (i32, i32) {
    %c0_i32 = arith.constant 0 : i32
    %c0_i32_0 = arith.constant 0 : i32
    %c0_i32_1 = arith.constant 0 : i32
    return %c0_i32, %c0_i32_0 : i32, i32
  }
  func.func @transform_3(%arg0: i32) -> (i32, i32) {
    %c0_i32 = arith.constant 0 : i32
    %c0_i32_0 = arith.constant 0 : i32
    %c0_i32_1 = arith.constant 0 : i32
    return %c0_i32, %c0_i32_0 : i32, i32
  }
  func.func @transform_4(%arg0: i32) -> (i32, i32) {
    %c0_i32 = arith.constant 0 : i32
    %c0_i32_0 = arith.constant 0 : i32
    %c0_i32_1 = arith.constant 0 : i32
    return %c0_i32, %c0_i32_0 : i32, i32
  }
  func.func @transform_5(%arg0: i32) -> (i32, i32) {
    %c0_i32 = arith.constant 0 : i32
    %c0_i32_0 = arith.constant 0 : i32
    %c0_i32_1 = arith.constant 0 : i32
    return %c0_i32, %c0_i32_0 : i32, i32
  }
  func.func @transform_6(%arg0: i32) -> (i32, i32) {
    %c0_i32 = arith.constant 0 : i32
    %c0_i32_0 = arith.constant 0 : i32
    %c0_i32_1 = arith.constant 0 : i32
    return %c0_i32, %c0_i32_0 : i32, i32
  }
  func.func @transform_7(%arg0: i32) -> (i32, i32) {
    %c0_i32 = arith.constant 0 : i32
    %c0_i32_0 = arith.constant 0 : i32
    %c0_i32_1 = arith.constant 0 : i32
    return %c0_i32, %c0_i32_0 : i32, i32
  }
  func.func @transform_8(%arg0: i32) -> (i32, i32) {
    %c0_i32 = arith.constant 0 : i32
    %c0_i32_0 = arith.constant 0 : i32
    return %arg0, %c0_i32 : i32, i32
  }
}

</mosaic_0001>

<llo_original>
// kernel: tpu_custom_call.1
$region0: #{tpu_custom_call.1}
  #allocation0 [shape = 'u32[]', space=smem, size = 0x4, offset = 0x4, fixed_abs, tag = 'smem constant byte address 0x4 - core index']
  #allocation1 [shape = 'u32[72,128]{1,0:T(1,128)}', space=vmem, size = 0x9000, scoped, tag = 'internal scratch']
  %s0 = inlined_call_operand.hbm [shape: f32[128,128], index: 0, kind: input, shape index: {}]
  %s1 = inlined_call_operand.vmem [shape: bf16[128,128], index: 1, kind: input, shape index: {}]
  %s2 = inlined_call_operand.vmem [shape: bf16[128,32], index: 2, kind: input, shape index: {}]
  %s3 = inlined_call_operand.vmem [shape: f32[1,32], index: 3, kind: input, shape index: {}]
  %s4 = inlined_call_operand.vmem [shape: bf16[32,128], index: 4, kind: input, shape index: {}]
  %s5 = inlined_call_operand.vmem [shape: f32[1,128], index: 5, kind: input, shape index: {}]
  %s6 = inlined_call_operand.vmem [shape: f32[1,128], index: 6, kind: input, shape index: {}]
  %s7 = inlined_call_operand.vmem [shape: f32[1,128], index: 7, kind: input, shape index: {}]
  %s8 = inlined_call_operand.hbm [shape: f32[128,128], index: 8, kind: output, shape index: {}]
  %s9 = sld [smem:[#allocation0]]
  $region69: #{tpu_custom_call.1} parent=0
    _
  %s11 = ssub.s32 1, %s9
  %s12 = scalar_select 0, %s11, %s9
  $region1: #{tpu_custom_call.1} parent=0
    #allocation2 [shape = 'u8[65536]{0}', space=vmem, size = 0x10000, scoped, tag = 'input window, operand 0']
    #allocation3 [shape = 's32[2]{0}', space=sflag, size = 0x8, scoped, tag = 'scoped memory for tpu_custom_call.1']
    #allocation4 [shape = 's32[2]{0}', space=sflag, size = 0x8, scoped, tag = 'scoped memory for tpu_custom_call.1']
    #allocation5 [shape = 'u8[65536]{0}', space=vmem, size = 0x10000, scoped, tag = 'output window, operand 0']
    %13 = vsyncpa [#allocation3], 0
    %s14 = scalar_lea.sflag [#allocation3], 1
    %15 = vsyncpa %s14, 0
    %16 = vsyncpa [#allocation4], 0
    %s17 = scalar_lea.sflag [#allocation4], 1
    %18 = vsyncpa %s17, 0
    loop: start=0, step=1, limit=4
    $region2: #{tpu_custom_call.1} parent=1 // loop_pre_header
      _
    $region3: #{tpu_custom_call.1} parent=1 // loop_header
      %s20 = sphi 0, %s24
      %p21 = scmp.ge.s32.totalorder %s20, 4
      %s30 = sphi 0, %s32
      %s33 = sphi 0, %s30
      %s34 = sphi 0, %s33
      %s50 = sphi 0, %s34
      %s56 = sphi 0, %s58
      %s59 = sphi 0, %s56
      %s60 = sphi 0, %s59
      %s76 = sphi 0, %s60
      %s80 = sphi 0, %s80
      %s82 = sphi 0, %s80
      %s83 = sphi 0, %s82
      %s97 = sphi 0, %s83
      %s101 = sphi 0, %s101
      %s103 = sphi 0, %s101
      %s104 = sphi 0, %s103
      %s118 = sphi 0, %s104
      %s122 = sphi 0, %s122
      %s124 = sphi 0, %s122
      %s125 = sphi 0, %s124
      %s139 = sphi 0, %s125
      %s143 = sphi 0, %s143
      %s145 = sphi 0, %s143
      %s146 = sphi 0, %s145
      %s160 = sphi 0, %s146
      %s164 = sphi 0, %s164
      %s166 = sphi 0, %s164
      %s167 = sphi 0, %s166
      %s181 = sphi 0, %s167
      %s185 = sphi 0, %s185
      %s187 = sphi 0, %s185
      %s188 = sphi 0, %s187
      %s202 = sphi 0, %s188
      %s208 = sphi 0, %s210
      %s211 = sphi 0, %s208
      %s212 = sphi 0, %s211
      %s228 = sphi 0, %s212
    $region4: #{tpu_custom_call.1} parent=1 // loop_header_branch
      %23 = sbr.rel (%p21) target = $region8
    $region5: #{tpu_custom_call.1} parent=1 // loop_body
      %s25 = ssub.s32 %s20, 1
      %s26 = ssub.s32 %s20, 2
      %s27 = sadd.s32 %s20, 1
      %s28 = ssub.s32 %s20, %s27
      %p29 = scmp.eq.s32.totalorder %s28, 0
      %s31 = sadd.s32 %s30, 1
      %s32 = scalar_select %p29, %s30, %s31
      %p35 = pneg %p29
      %p36 = scmp.eq.s32.totalorder %s20, 1
      %p37 = por %p35, %p36
      %p38 = scmp.ne.s32.totalorder %s30, %s33
      %p39 = scmp.eq.s32.totalorder %s20, 0
      %p40 = por %p38, %p39
      %p41 = scmp.ne.s32.totalorder %s30, %s33
      %p42 = scmp.eq.s32.totalorder %s25, 1
      %p43 = por %p41, %p42
      %p44 = scmp.ne.s32.totalorder %s33, %s34
      %p45 = scmp.eq.s32.totalorder %s25, 0
      %p46 = por %p44, %p45
      %p47 = scmp.ne.s32.totalorder %s33, %s34
      %p48 = scmp.eq.s32.totalorder %s26, 1
      %p49 = por %p47, %p48
      %p51 = scmp.ne.s32.totalorder %s34, %s50
      %p52 = scmp.eq.s32.totalorder %s26, 0
      %p53 = por %p51, %p52
      %s54 = ssub.s32 %s20, %s27
      %p55 = scmp.eq.s32.totalorder %s54, 0
      %s57 = sadd.s32 %s56, 1
      %s58 = scalar_select %p55, %s56, %s57
      %p61 = pneg %p55
      %p62 = scmp.eq.s32.totalorder %s20, 1
      %p63 = por %p61, %p62
      %p64 = scmp.ne.s32.totalorder %s56, %s59
      %p65 = scmp.eq.s32.totalorder %s20, 0
      %p66 = por %p64, %p65
      %p67 = scmp.ne.s32.totalorder %s56, %s59
      %p68 = scmp.eq.s32.totalorder %s25, 1
      %p69 = por %p67, %p68
      %p70 = scmp.ne.s32.totalorder %s59, %s60
      %p71 = scmp.eq.s32.totalorder %s25, 0
      %p72 = por %p70, %p71
      %p73 = scmp.ne.s32.totalorder %s59, %s60
      %p74 = scmp.eq.s32.totalorder %s26, 1
      %p75 = por %p73, %p74
      %p77 = scmp.ne.s32.totalorder %s60, %s76
      %p78 = scmp.eq.s32.totalorder %s26, 0
      %p79 = por %p77, %p78
      %s81 = sadd.s32 %s80, 1
      %p84 = scmp.eq.s32.totalorder %s20, 1
      %p85 = scmp.ne.s32.totalorder %s80, %s82
      %p86 = scmp.eq.s32.totalorder %s20, 0
      %p87 = por %p85, %p86
      %p88 = scmp.ne.s32.totalorder %s80, %s82
      %p89 = scmp.eq.s32.totalorder %s25, 1
      %p90 = por %p88, %p89
      %p91 = scmp.ne.s32.totalorder %s82, %s83
      %p92 = scmp.eq.s32.totalorder %s25, 0
      %p93 = por %p91, %p92
      %p94 = scmp.ne.s32.totalorder %s82, %s83
      %p95 = scmp.eq.s32.totalorder %s26, 1
      %p96 = por %p94, %p95
      %p98 = scmp.ne.s32.totalorder %s83, %s97
      %p99 = scmp.eq.s32.totalorder %s26, 0
      %p100 = por %p98, %p99
      %s102 = sadd.s32 %s101, 1
      %p105 = scmp.eq.s32.totalorder %s20, 1
      %p106 = scmp.ne.s32.totalorder %s101, %s103
      %p107 = scmp.eq.s32.totalorder %s20, 0
      %p108 = por %p106, %p107
      %p109 = scmp.ne.s32.totalorder %s101, %s103
      %p110 = scmp.eq.s32.totalorder %s25, 1
      %p111 = por %p109, %p110
      %p112 = scmp.ne.s32.totalorder %s103, %s104
      %p113 = scmp.eq.s32.totalorder %s25, 0
      %p114 = por %p112, %p113
      %p115 = scmp.ne.s32.totalorder %s103, %s104
      %p116 = scmp.eq.s32.totalorder %s26, 1
      %p117 = por %p115, %p116
      %p119 = scmp.ne.s32.totalorder %s104, %s118
      %p120 = scmp.eq.s32.totalorder %s26, 0
      %p121 = por %p119, %p120
      %s123 = sadd.s32 %s122, 1
      %p126 = scmp.eq.s32.totalorder %s20, 1
      %p127 = scmp.ne.s32.totalorder %s122, %s124
      %p128 = scmp.eq.s32.totalorder %s20, 0
      %p129 = por %p127, %p128
      %p130 = scmp.ne.s32.totalorder %s122, %s124
      %p131 = scmp.eq.s32.totalorder %s25, 1
      %p132 = por %p130, %p131
      %p133 = scmp.ne.s32.totalorder %s124, %s125
      %p134 = scmp.eq.s32.totalorder %s25, 0
      %p135 = por %p133, %p134
      %p136 = scmp.ne.s32.totalorder %s124, %s125
      %p137 = scmp.eq.s32.totalorder %s26, 1
      %p138 = por %p136, %p137
      %p140 = scmp.ne.s32.totalorder %s125, %s139
      %p141 = scmp.eq.s32.totalorder %s26, 0
      %p142 = por %p140, %p141
      %s144 = sadd.s32 %s143, 1
      %p147 = scmp.eq.s32.totalorder %s20, 1
      %p148 = scmp.ne.s32.totalorder %s143, %s145
      %p149 = scmp.eq.s32.totalorder %s20, 0
      %p150 = por %p148, %p149
      %p151 = scmp.ne.s32.totalorder %s143, %s145
      %p152 = scmp.eq.s32.totalorder %s25, 1
      %p153 = por %p151, %p152
      %p154 = scmp.ne.s32.totalorder %s145, %s146
      %p155 = scmp.eq.s32.totalorder %s25, 0
      %p156 = por %p154, %p155
      %p157 = scmp.ne.s32.totalorder %s145, %s146
      %p158 = scmp.eq.s32.totalorder %s26, 1
      %p159 = por %p157, %p158
      %p161 = scmp.ne.s32.totalorder %s146, %s160
      %p162 = scmp.eq.s32.totalorder %s26, 0
      %p163 = por %p161, %p162
      %s165 = sadd.s32 %s164, 1
      %p168 = scmp.eq.s32.totalorder %s20, 1
      %p169 = scmp.ne.s32.totalorder %s164, %s166
      %p170 = scmp.eq.s32.totalorder %s20, 0
      %p171 = por %p169, %p170
      %p172 = scmp.ne.s32.totalorder %s164, %s166
      %p173 = scmp.eq.s32.totalorder %s25, 1
      %p174 = por %p172, %p173
      %p175 = scmp.ne.s32.totalorder %s166, %s167
      %p176 = scmp.eq.s32.totalorder %s25, 0
      %p177 = por %p175, %p176
      %p178 = scmp.ne.s32.totalorder %s166, %s167
      %p179 = scmp.eq.s32.totalorder %s26, 1
      %p180 = por %p178, %p179
      %p182 = scmp.ne.s32.totalorder %s167, %s181
      %p183 = scmp.eq.s32.totalorder %s26, 0
      %p184 = por %p182, %p183
      %s186 = sadd.s32 %s185, 1
      %p189 = scmp.eq.s32.totalorder %s20, 1
      %p190 = scmp.ne.s32.totalorder %s185, %s187
      %p191 = scmp.eq.s32.totalorder %s20, 0
      %p192 = por %p190, %p191
      %p193 = scmp.ne.s32.totalorder %s185, %s187
      %p194 = scmp.eq.s32.totalorder %s25, 1
      %p195 = por %p193, %p194
      %p196 = scmp.ne.s32.totalorder %s187, %s188
      %p197 = scmp.eq.s32.totalorder %s25, 0
      %p198 = por %p196, %p197
      %p199 = scmp.ne.s32.totalorder %s187, %s188
      %p200 = scmp.eq.s32.totalorder %s26, 1
      %p201 = por %p199, %p200
      %p203 = scmp.ne.s32.totalorder %s188, %s202
      %p204 = scmp.eq.s32.totalorder %s26, 0
      %p205 = por %p203, %p204
      %s206 = ssub.s32 %s20, %s27
      %p207 = scmp.eq.s32.totalorder %s206, 0
      %s209 = sadd.s32 %s208, 1
      %s210 = scalar_select %p207, %s208, %s209
      %p213 = pneg %p207
      %p214 = scmp.eq.s32.totalorder %s20, 1
      %p215 = por %p213, %p214
      %p216 = scmp.ne.s32.totalorder %s208, %s211
      %p217 = scmp.eq.s32.totalorder %s20, 0
      %p218 = por %p216, %p217
      %p219 = scmp.ne.s32.totalorder %s208, %s211
      %p220 = scmp.eq.s32.totalorder %s25, 1
      %p221 = por %p219, %p220
      %p222 = scmp.ne.s32.totalorder %s211, %s212
      %p223 = scmp.eq.s32.totalorder %s25, 0
      %p224 = por %p222, %p223
      %p225 = scmp.ne.s32.totalorder %s211, %s212
      %p226 = scmp.eq.s32.totalorder %s26, 1
      %p227 = por %p225, %p226
      %p229 = scmp.ne.s32.totalorder %s212, %s228
      %p230 = scmp.eq.s32.totalorder %s26, 0
      %p231 = por %p229, %p230
      %p232 = scmp.le.s32.totalorder 1, %s20
      %p233 = scmp.lt.s32.totalorder %s20, 3
      %p234 = pnand %p232, %p233
      %p235 = pneg %p234
      // Predicated region
      $region9: #{tpu_custom_call.1} parent=5 // pred_check
        _
      $region10: #{tpu_custom_call.1} parent=5 // pred_check_branch
        %237 = sbr.rel (%p234) target = $region12
      $region11: #{tpu_custom_call.1} parent=5 // pred_region
        %s238 = ssub.s32 %s20, 1
        // Predicated region
        $region13: #{tpu_custom_call.1} parent=11 // pred_check
          %p239 = pneg %p93
        $region14: #{tpu_custom_call.1} parent=11 // pred_check_branch
          %241 = sbr.rel (%p239) target = $region16
        $region15: #{tpu_custom_call.1} parent=11 // pred_region
          _
        $region16: #{tpu_custom_call.1} parent=11 // pred_fallthru
          _
        // Predicated region
        $region17: #{tpu_custom_call.1} parent=11 // pred_check
          %p242 = pneg %p114
        $region18: #{tpu_custom_call.1} parent=11 // pred_check_branch
          %244 = sbr.rel (%p242) target = $region20
        $region19: #{tpu_custom_call.1} parent=11 // pred_region
          _
        $region20: #{tpu_custom_call.1} parent=11 // pred_fallthru
          _
        // Predicated region
        $region21: #{tpu_custom_call.1} parent=11 // pred_check
          %p245 = pneg %p135
        $region22: #{tpu_custom_call.1} parent=11 // pred_check_branch
          %247 = sbr.rel (%p245) target = $region24
        $region23: #{tpu_custom_call.1} parent=11 // pred_region
          _
        $region24: #{tpu_custom_call.1} parent=11 // pred_fallthru
          _
        // Predicated region
        $region25: #{tpu_custom_call.1} parent=11 // pred_check
          %p248 = pneg %p156
        $region26: #{tpu_custom_call.1} parent=11 // pred_check_branch
          %250 = sbr.rel (%p248) target = $region28
        $region27: #{tpu_custom_call.1} parent=11 // pred_region
          _
        $region28: #{tpu_custom_call.1} parent=11 // pred_fallthru
          _
        // Predicated region
        $region29: #{tpu_custom_call.1} parent=11 // pred_check
          %p251 = pneg %p177
        $region30: #{tpu_custom_call.1} parent=11 // pred_check_branch
          %253 = sbr.rel (%p251) target = $region32
        $region31: #{tpu_custom_call.1} parent=11 // pred_region
          _
        $region32: #{tpu_custom_call.1} parent=11 // pred_fallthru
          _
        // Predicated region
        $region33: #{tpu_custom_call.1} parent=11 // pred_check
          %p254 = pneg %p198
        $region34: #{tpu_custom_call.1} parent=11 // pred_check_branch
          %256 = sbr.rel (%p254) target = $region36
        $region35: #{tpu_custom_call.1} parent=11 // pred_region
          _
        $region36: #{tpu_custom_call.1} parent=11 // pred_fallthru
          _
      $region12: #{tpu_custom_call.1} parent=5 // pred_fallthru
        _
      %p257 = scmp.lt.s32.totalorder %s20, 2
      // Predicated region
      $region37: #{tpu_custom_call.1} parent=5 // pred_check
        %p258 = pneg %p257
      $region38: #{tpu_custom_call.1} parent=5 // pred_check_branch
        %260 = sbr.rel (%p258) target = $region40
      $region39: #{tpu_custom_call.1} parent=5 // pred_region
        // Predicated region
        $region41: #{tpu_custom_call.1} parent=39 // pred_check
          %p261 = pneg %p40
        $region42: #{tpu_custom_call.1} parent=39 // pred_check_branch
          %263 = sbr.rel (%p261) target = $region44
        $region43: #{tpu_custom_call.1} parent=39 // pred_region
          %s264 = sand.u32 %s30, 1
          %s265 = scalar_lea.sflag [#allocation3], %s264
          %s266 = sand.u32 %s30, 1
          %s267 = smul.addr %s266, 64
          %s268 = scalar_lea.vmem [#allocation2], %s267
          %s269 = smul.u32 8, %s20
          %271 = vsyncadd %s265, 0
          %s272 = smul.addr %s269, 8
          %s273 = scalar_lea.hbm %s0, %s272
          %s274 = sshll.u32 %s273, 4
          %s275 = int_to_ptr.hbm [resolvable:$true] %s274
          %s276 = sshll.u32 %s268, 4
          %s277 = int_to_ptr.vmem [resolvable:$true] %s276
          %282 = dma.hbm_to_vmem [thread:$0]  %s275, 1024, %s277, %s265, 128, 128, 8
        $region44: #{tpu_custom_call.1} parent=39 // pred_fallthru
          _
        // Predicated region
        $region45: #{tpu_custom_call.1} parent=39 // pred_check
          %p283 = pneg %p66
        $region46: #{tpu_custom_call.1} parent=39 // pred_check_branch
          %285 = sbr.rel (%p283) target = $region48
        $region47: #{tpu_custom_call.1} parent=39 // pred_region
          %s286 = smul.u32 8, %s20
          %p287 = scmp.lt.s32.totalorder %s286, 15
          %s288 = scalar_select %p287, %s286, 15
          %s289 = smul.addr %s288, 4
          %s290 = scalar_lea.vmem %s1, %s289
          %s291 = smul.u32 8, %s20
        $region48: #{tpu_custom_call.1} parent=39 // pred_fallthru
          _
      $region40: #{tpu_custom_call.1} parent=5 // pred_fallthru
        _
      %p292 = scmp.le.s32.totalorder 1, %s20
      %p293 = scmp.lt.s32.totalorder %s20, 3
      %p294 = pnand %p292, %p293
      %p295 = pneg %p294
      // Predicated region
      $region49: #{tpu_custom_call.1} parent=5 // pred_check
        _
      $region50: #{tpu_custom_call.1} parent=5 // pred_check_branch
        %297 = sbr.rel (%p294) target = $region52
      $region51: #{tpu_custom_call.1} parent=5 // pred_region
        %s298 = ssub.s32 %s20, 1
        %s299 = sand.u32 %s33, 1
        %s300 = scalar_lea.sflag [#allocation3], %s299
        %s301 = sand.u32 %s33, 1
        %s302 = smul.addr %s301, 64
        %s303 = scalar_lea.vmem [#allocation2], %s302
        // Predicated region
        $region53: #{tpu_custom_call.1} parent=51 // pred_check
          %p304 = pneg %p46
        $region54: #{tpu_custom_call.1} parent=51 // pred_check_branch
          %306 = sbr.rel (%p304) target = $region56
        $region55: #{tpu_custom_call.1} parent=51 // pred_region
          %308 = dma.done %s300, 1024
        $region56: #{tpu_custom_call.1} parent=51 // pred_fallthru
          _
        %s309 = sand.u32 %s33, 1
        %s310 = scalar_lea.sflag [#allocation3], %s309
        %s311 = sand.u32 %s33, 1
        %s312 = smul.addr %s311, 64
        %s313 = scalar_lea.vmem [#allocation2], %s312
        %p314 = pneg %p46
        %p315 = pneg %p43
        %s316 = smul.u32 8, %s25
        %p317 = scmp.lt.s32.totalorder %s316, 15
        %s318 = scalar_select %p317, %s316, 15
        %s319 = smul.addr %s318, 4
        %s320 = scalar_lea.vmem %s1, %s319
        %p321 = pneg %p72
        %p322 = pneg %p69
        %p323 = pneg %p93
        %p324 = pneg %p90
        %p325 = pneg %p114
        %p326 = pneg %p111
        %p327 = pneg %p135
        %p328 = pneg %p132
        %p329 = pneg %p156
        %p330 = pneg %p153
        %p331 = pneg %p177
        %p332 = pneg %p174
        %p333 = pneg %p198
        %p334 = pneg %p195
        %p335 = pneg %p224
        %p336 = pneg %p221
        %s337 = sand.u32 %s211, 1
        %s338 = scalar_lea.sflag [#allocation4], %s337
        %s339 = sand.u32 %s211, 1
        %s340 = smul.addr %s339, 64
        %s341 = scalar_lea.vmem [#allocation5], %s340
        %s342 = smul.u32 8, %s25
        %s343 = smul.u32 8, %s25
        %p344 = scmp.lt.s32.totalorder %s343, 15
        %s345 = scalar_select %p344, %s343, 15
        %s346 = smul.addr %s345, 4
        %s347 = scalar_lea.vmem %s1, %s346
        %s348 = smul.u32 8, %s25
        %s349 = smul.u32 8, %s25
        %v351 = vld [vmem:[%s303] sm:$0xff]
        %v352 = vld [vmem:[%s303 + $0x8] sm:$0xff]
        %v353 = vld [vmem:[%s303 + $0x10] sm:$0xff]
        %v354 = vld [vmem:[%s303 + $0x18] sm:$0xff]
        %v355 = vld [vmem:[%s303 + $0x20] sm:$0xff]
        %v356 = vld [vmem:[%s303 + $0x28] sm:$0xff]
        %v357 = vld [vmem:[%s303 + $0x30] sm:$0xff]
        %v358 = vld [vmem:[%s303 + $0x38] sm:$0xff]
        %v359 = vld [vmem:[%s347] sm:$0xf]
        %v360 = vld [vmem:[%s347 + $0x4] sm:$0xf]
        %v361 = vld [vmem:[%s347 + $0x8] sm:$0xf]
        %v362 = vld [vmem:[%s347 + $0xc] sm:$0xf]
        %v363 = vld [vmem:[%s347 + $0x10] sm:$0xf]
        %v364 = vld [vmem:[%s347 + $0x14] sm:$0xf]
        %v365 = vld [vmem:[%s347 + $0x18] sm:$0xf]
        %v366 = vld [vmem:[%s347 + $0x1c] sm:$0xf]
        %v367 = vpack.c.bf16 %v351, %v351
        %v368 = vpack.c.bf16 %v352, %v352
        %v369 = vpack.c.bf16 %v353, %v353
        %v370 = vpack.c.bf16 %v354, %v354
        %v371 = vpack.c.bf16 %v355, %v355
        %v372 = vpack.c.bf16 %v356, %v356
        %v373 = vpack.c.bf16 %v357, %v357
        %v374 = vpack.c.bf16 %v358, %v358
        %v375 = vunpack.c.l.bf16 %v367
        %v376 = vunpack.c.l.bf16 %v368
        %v377 = vunpack.c.l.bf16 %v369
        %v378 = vunpack.c.l.bf16 %v370
        %v379 = vunpack.c.l.bf16 %v371
        %v380 = vunpack.c.l.bf16 %v372
        %v381 = vunpack.c.l.bf16 %v373
        %v382 = vunpack.c.l.bf16 %v374
        %v383 = vunpack.c.l.bf16 %v359
        %v384 = vunpack.c.l.bf16 %v360
        %v385 = vunpack.c.l.bf16 %v361
        %v386 = vunpack.c.l.bf16 %v362
        %v387 = vunpack.c.l.bf16 %v363
        %v388 = vunpack.c.l.bf16 %v364
        %v389 = vunpack.c.l.bf16 %v365
        %v390 = vunpack.c.l.bf16 %v366
        %v391 = vmul.f32 %v375, %v383
        %v392 = vmul.f32 %v376, %v384
        %v393 = vmul.f32 %v377, %v385
        %v394 = vmul.f32 %v378, %v386
        %v395 = vmul.f32 %v379, %v387
        %v396 = vmul.f32 %v380, %v388
        %v397 = vmul.f32 %v381, %v389
        %v398 = vmul.f32 %v382, %v390
        %v399 = vpack.c.bf16 %v392, %v391
        %v400 = vpack.c.bf16 %v394, %v393
        %v401 = vpack.c.bf16 %v396, %v395
        %v402 = vpack.c.bf16 %v398, %v397
        %v403 = vld [vmem:[%s2] sm:$0xf]
        %v404 = vld [vmem:[%s2 + $0x4] sm:$0xf]
        %v405 = vld [vmem:[%s2 + $0x8] sm:$0xf]
        %v406 = vld [vmem:[%s2 + $0xc] sm:$0xf]
        %v407 = vld [vmem:[%s2 + $0x10] sm:$0xf]
        %v408 = vld [vmem:[%s2 + $0x14] sm:$0xf]
        %v409 = vld [vmem:[%s2 + $0x18] sm:$0xf]
        %v410 = vld [vmem:[%s2 + $0x1c] sm:$0xf]
        %v411 = vld [vmem:[%s2 + $0x20] sm:$0xf]
        %v412 = vld [vmem:[%s2 + $0x24] sm:$0xf]
        %v413 = vld [vmem:[%s2 + $0x28] sm:$0xf]
        %v414 = vld [vmem:[%s2 + $0x2c] sm:$0xf]
        %v415 = vld [vmem:[%s2 + $0x30] sm:$0xf]
        %v416 = vld [vmem:[%s2 + $0x34] sm:$0xf]
        %v417 = vld [vmem:[%s2 + $0x38] sm:$0xf]
        %v418 = vld [vmem:[%s2 + $0x3c] sm:$0xf]
        %v419 = vld [vmem:[%s3] sm:$0x1]
        %v421 = vperm.slane %v419, 0
        %v439 = vunpack.c.l.b16 %v403
        %v440 = vunpack.c.l.b16 %v404
        %v441 = vunpack.c.l.b16 %v405
        %v442 = vunpack.c.l.b16 %v406
        %v443 = vunpack.c.l.b16 %v407
        %v444 = vunpack.c.l.b16 %v408
        %v445 = vunpack.c.l.b16 %v409
        %v446 = vunpack.c.l.b16 %v410
        %v447 = vunpack.c.l.b16 %v411
        %v448 = vunpack.c.l.b16 %v412
        %v449 = vunpack.c.l.b16 %v413
        %v450 = vunpack.c.l.b16 %v414
        %v451 = vunpack.c.l.b16 %v415
        %v452 = vunpack.c.l.b16 %v416
        %v453 = vunpack.c.l.b16 %v417
        %v454 = vunpack.c.l.b16 %v418
        %v455 = vpack.c.b16 %v440, %v439
        %v456 = vpack.c.b16 %v442, %v441
        %v457 = vpack.c.b16 %v444, %v443
        %v458 = vpack.c.b16 %v446, %v445
        %v459 = vpack.c.b16 %v448, %v447
        %v460 = vpack.c.b16 %v450, %v449
        %v461 = vpack.c.b16 %v452, %v451
        %v462 = vpack.c.b16 %v454, %v453
        %471 = vmatpush.bf16.msra.mxu0 %v462
        %472 = vmatpush.bf16.msra.mxu0 %v461
        %473 = vmatpush.bf16.msra.mxu0 %v460
        %474 = vmatpush.bf16.msra.mxu0 %v459
        %475 = vmatpush.bf16.msra.mxu0 %v458
        %476 = vmatpush.bf16.msra.mxu0 %v457
        %477 = vmatpush.bf16.msra.mxu0 %v456
        %478 = vmatpush.bf16.msra.mxu0 %v455
        %479 = vmatmul.bf16.gmra.mxu0 %v399
        %v480 = vpop.f32.mrf.mxu0
        %v481 = vadd.f32 %v421, %v480
        %v482 = vpop.f32.mrf.mxu0
        %v483 = vadd.f32 %v421, %v482
        %484 = vmatmul.bf16.gmra.mxu0 %v400
        %v485 = vpop.f32.mrf.mxu0
        %v486 = vadd.f32 %v421, %v485
        %v487 = vpop.f32.mrf.mxu0
        %v488 = vadd.f32 %v421, %v487
        %489 = vmatmul.bf16.gmra.mxu0 %v401
        %v490 = vpop.f32.mrf.mxu0
        %v491 = vadd.f32 %v421, %v490
        %v492 = vpop.f32.mrf.mxu0
        %v493 = vadd.f32 %v421, %v492
        %494 = vmatmul.bf16.gmra.mxu0 %v402
        %v495 = vpop.f32.mrf.mxu0
        %v496 = vadd.f32 %v421, %v495
        %v497 = vpop.f32.mrf.mxu0
        %v498 = vadd.f32 %v421, %v497
        %499 = vdwg.mxu0
        %v500 = vmax.f32 %v481, 0.0
        %v501 = vmax.f32 %v483, 0.0
        %v502 = vmax.f32 %v486, 0.0
        %v503 = vmax.f32 %v488, 0.0
        %v504 = vmax.f32 %v491, 0.0
        %v505 = vmax.f32 %v493, 0.0
        %v506 = vmax.f32 %v496, 0.0
        %v507 = vmax.f32 %v498, 0.0
        %v508 = vpack.c.bf16 %v501, %v500
        %v509 = vpack.c.bf16 %v503, %v502
        %v510 = vpack.c.bf16 %v505, %v504
        %v511 = vpack.c.bf16 %v507, %v506
        %v512 = vld [vmem:[%s4] sm:$0xf]
        %v513 = vld [vmem:[%s4 + $0x4] sm:$0xf]
        %v514 = vld [vmem:[%s4 + $0x8] sm:$0xf]
        %v515 = vld [vmem:[%s4 + $0xc] sm:$0xf]
        %v516 = vld [vmem:[%s5] sm:$0x1]
        %v518 = vperm.slane %v516, 0
        %v524 = vunpack.c.l.b16 %v512
        %v525 = vunpack.c.l.b16 %v513
        %v526 = vunpack.c.l.b16 %v514
        %v527 = vunpack.c.l.b16 %v515
        %v528 = vpack.c.b16 %v525, %v524
        %v529 = vpack.c.b16 %v527, %v526
        %vm532 = vcmask 261120
        %v534 = vsel %vm532, %v508, 0
        %v537 = vsel %vm532, %v509, 0
        %v540 = vsel %vm532, %v510, 0
        %v543 = vsel %vm532, %v511, 0
        %545 = vmatpush.bf16.msra.mxu0 0
        %546 = vmatpush.bf16.msra.mxu0 0
        %547 = vmatpush.bf16.msra.mxu0 0
        %548 = vmatpush.bf16.msra.mxu0 0
        %549 = vmatpush.bf16.msra.mxu0 0
        %550 = vmatpush.bf16.msra.mxu0 0
        %551 = vmatpush.bf16.msra.mxu0 %v529
        %552 = vmatpush.bf16.msra.mxu0 %v528
        %553 = vmatmul.bf16.gmra.mxu0 %v534
        %v554 = vpop.f32.mrf.mxu0
        %v555 = vadd.f32 %v518, %v554
        %v556 = vpop.f32.mrf.mxu0
        %v557 = vadd.f32 %v518, %v556
        %558 = vmatmul.bf16.gmra.mxu0 %v537
        %v559 = vpop.f32.mrf.mxu0
        %v560 = vadd.f32 %v518, %v559
        %v561 = vpop.f32.mrf.mxu0
        %v562 = vadd.f32 %v518, %v561
        %563 = vmatmul.bf16.gmra.mxu0 %v540
        %v564 = vpop.f32.mrf.mxu0
        %v565 = vadd.f32 %v518, %v564
        %v566 = vpop.f32.mrf.mxu0
        %v567 = vadd.f32 %v518, %v566
        %568 = vmatmul.bf16.gmra.mxu0 %v543
        %v569 = vpop.f32.mrf.mxu0
        %v570 = vadd.f32 %v518, %v569
        %v571 = vpop.f32.mrf.mxu0
        %v572 = vadd.f32 %v518, %v571
        %573 = vdwg.mxu0
        %574 = vadd.xlane.f32.xlu0 %v555
        %v575 = vpop.xlane.xlu0 %574
        %576 = vadd.xlane.f32.xlu0 %v557
        %v577 = vpop.xlane.xlu0 %576
        %578 = vadd.xlane.f32.xlu0 %v560
        %v579 = vpop.xlane.xlu0 %578
        %580 = vadd.xlane.f32.xlu0 %v562
        %v581 = vpop.xlane.xlu0 %580
        %582 = vadd.xlane.f32.xlu0 %v565
        %v583 = vpop.xlane.xlu0 %582
        %584 = vadd.xlane.f32.xlu0 %v567
        %v585 = vpop.xlane.xlu0 %584
        %586 = vadd.xlane.f32.xlu0 %v570
        %v587 = vpop.xlane.xlu0 %586
        %588 = vadd.xlane.f32.xlu0 %v572
        %v589 = vpop.xlane.xlu0 %588
        %v590 = vrcp.pop 128.0
        %v591 = vmul.f32 128.0, %v590
        %v592 = vsub.f32 1.0, %v591
        %v593 = vmul.f32 %v590, %v592
        %v594 = vadd.f32 %v590, %v593
        %vm595 = vweird.f32 %v590
        %v596 = vsel %vm595, %v590, %v594
        %v597 = vmul.f32 %v575, %v596
        %v598 = vmul.f32 %v577, %v596
        %v599 = vmul.f32 %v579, %v596
        %v600 = vmul.f32 %v581, %v596
        %v601 = vmul.f32 %v583, %v596
        %v602 = vmul.f32 %v585, %v596
        %v603 = vmul.f32 %v587, %v596
        %v604 = vmul.f32 %v589, %v596
        %v605 = vmul.f32 %v555, %v555
        %v606 = vmul.f32 %v557, %v557
        %v607 = vmul.f32 %v560, %v560
        %v608 = vmul.f32 %v562, %v562
        %v609 = vmul.f32 %v565, %v565
        %v610 = vmul.f32 %v567, %v567
        %v611 = vmul.f32 %v570, %v570
        %v612 = vmul.f32 %v572, %v572
        %613 = vadd.xlane.f32.xlu0 %v605
        %v614 = vpop.xlane.xlu0 %613
        %615 = vadd.xlane.f32.xlu0 %v606
        %v616 = vpop.xlane.xlu0 %615
        %617 = vadd.xlane.f32.xlu0 %v607
        %v618 = vpop.xlane.xlu0 %617
        %619 = vadd.xlane.f32.xlu0 %v608
        %v620 = vpop.xlane.xlu0 %619
        %621 = vadd.xlane.f32.xlu0 %v609
        %v622 = vpop.xlane.xlu0 %621
        %623 = vadd.xlane.f32.xlu0 %v610
        %v624 = vpop.xlane.xlu0 %623
        %625 = vadd.xlane.f32.xlu0 %v611
        %v626 = vpop.xlane.xlu0 %625
        %627 = vadd.xlane.f32.xlu0 %v612
        %v628 = vpop.xlane.xlu0 %627
        %v629 = vmul.f32 %v614, %v596
        %v630 = vmul.f32 %v616, %v596
        %v631 = vmul.f32 %v618, %v596
        %v632 = vmul.f32 %v620, %v596
        %v633 = vmul.f32 %v622, %v596
        %v634 = vmul.f32 %v624, %v596
        %v635 = vmul.f32 %v626, %v596
        %v636 = vmul.f32 %v628, %v596
        %v637 = vmul.f32 %v597, %v597
        %v638 = vmul.f32 %v598, %v598
        %v639 = vmul.f32 %v599, %v599
        %v640 = vmul.f32 %v600, %v600
        %v641 = vmul.f32 %v601, %v601
        %v642 = vmul.f32 %v602, %v602
        %v643 = vmul.f32 %v603, %v603
        %v644 = vmul.f32 %v604, %v604
        %v645 = vsub.f32 %v629, %v637
        %v646 = vsub.f32 %v630, %v638
        %v647 = vsub.f32 %v631, %v639
        %v648 = vsub.f32 %v632, %v640
        %v649 = vsub.f32 %v633, %v641
        %v650 = vsub.f32 %v634, %v642
        %v651 = vsub.f32 %v635, %v643
        %v652 = vsub.f32 %v636, %v644
        %v653 = vmax.f32 %v645, 0.0
        %v654 = vmax.f32 %v646, 0.0
        %v655 = vmax.f32 %v647, 0.0
        %v656 = vmax.f32 %v648, 0.0
        %v657 = vmax.f32 %v649, 0.0
        %v658 = vmax.f32 %v650, 0.0
        %v659 = vmax.f32 %v651, 0.0
        %v660 = vmax.f32 %v652, 0.0
        %v661 = vsub.f32 %v555, %v597
        %v662 = vsub.f32 %v557, %v598
        %v663 = vsub.f32 %v560, %v599
        %v664 = vsub.f32 %v562, %v600
        %v665 = vsub.f32 %v565, %v601
        %v666 = vsub.f32 %v567, %v602
        %v667 = vsub.f32 %v570, %v603
        %v668 = vsub.f32 %v572, %v604
        %v669 = vadd.f32 %v653, 1e-06
        %v670 = vadd.f32 %v654, 1e-06
        %v671 = vadd.f32 %v655, 1e-06
        %v672 = vadd.f32 %v656, 1e-06
        %v673 = vadd.f32 %v657, 1e-06
        %v674 = vadd.f32 %v658, 1e-06
        %v675 = vadd.f32 %v659, 1e-06
        %v676 = vadd.f32 %v660, 1e-06
        %v677 = vrsqrt.pop %v669
        %v678 = vmul.f32 %v677, %v669
        %v679 = vmul.f32 %v678, %v677
        %v680 = vmul.f32 0.5, %v679
        %v681 = vsub.f32 1.5, %v680
        %v682 = vmul.f32 %v677, %v681
        %vm683 = vweird.f32 %v669
        %vm684 = vweird.f32 %v677
        %vm685 = vmor %vm683, %vm684
        %v686 = vsel %vm685, %v677, %v682
        %v687 = vrsqrt.pop %v670
        %v688 = vmul.f32 %v687, %v670
        %v689 = vmul.f32 %v688, %v687
        %v690 = vmul.f32 0.5, %v689
        %v691 = vsub.f32 1.5, %v690
        %v692 = vmul.f32 %v687, %v691
        %vm693 = vweird.f32 %v670
        %vm694 = vweird.f32 %v687
        %vm695 = vmor %vm693, %vm694
        %v696 = vsel %vm695, %v687, %v692
        %v697 = vrsqrt.pop %v671
        %v698 = vmul.f32 %v697, %v671
        %v699 = vmul.f32 %v698, %v697
        %v700 = vmul.f32 0.5, %v699
        %v701 = vsub.f32 1.5, %v700
        %v702 = vmul.f32 %v697, %v701
        %vm703 = vweird.f32 %v671
        %vm704 = vweird.f32 %v697
        %vm705 = vmor %vm703, %vm704
        %v706 = vsel %vm705, %v697, %v702
        %v707 = vrsqrt.pop %v672
        %v708 = vmul.f32 %v707, %v672
        %v709 = vmul.f32 %v708, %v707
        %v710 = vmul.f32 0.5, %v709
        %v711 = vsub.f32 1.5, %v710
        %v712 = vmul.f32 %v707, %v711
        %vm713 = vweird.f32 %v672
        %vm714 = vweird.f32 %v707
        %vm715 = vmor %vm713, %vm714
        %v716 = vsel %vm715, %v707, %v712
        %v717 = vrsqrt.pop %v673
        %v718 = vmul.f32 %v717, %v673
        %v719 = vmul.f32 %v718, %v717
        %v720 = vmul.f32 0.5, %v719
        %v721 = vsub.f32 1.5, %v720
        %v722 = vmul.f32 %v717, %v721
        %vm723 = vweird.f32 %v673
        %vm724 = vweird.f32 %v717
        %vm725 = vmor %vm723, %vm724
        %v726 = vsel %vm725, %v717, %v722
        %v727 = vrsqrt.pop %v674
        %v728 = vmul.f32 %v727, %v674
        %v729 = vmul.f32 %v728, %v727
        %v730 = vmul.f32 0.5, %v729
        %v731 = vsub.f32 1.5, %v730
        %v732 = vmul.f32 %v727, %v731
        %vm733 = vweird.f32 %v674
        %vm734 = vweird.f32 %v727
        %vm735 = vmor %vm733, %vm734
        %v736 = vsel %vm735, %v727, %v732
        %v737 = vrsqrt.pop %v675
        %v738 = vmul.f32 %v737, %v675
        %v739 = vmul.f32 %v738, %v737
        %v740 = vmul.f32 0.5, %v739
        %v741 = vsub.f32 1.5, %v740
        %v742 = vmul.f32 %v737, %v741
        %vm743 = vweird.f32 %v675
        %vm744 = vweird.f32 %v737
        %vm745 = vmor %vm743, %vm744
        %v746 = vsel %vm745, %v737, %v742
        %v747 = vrsqrt.pop %v676
        %v748 = vmul.f32 %v747, %v676
        %v749 = vmul.f32 %v748, %v747
        %v750 = vmul.f32 0.5, %v749
        %v751 = vsub.f32 1.5, %v750
        %v752 = vmul.f32 %v747, %v751
        %vm753 = vweird.f32 %v676
        %vm754 = vweird.f32 %v747
        %vm755 = vmor %vm753, %vm754
        %v756 = vsel %vm755, %v747, %v752
        %v757 = vmul.f32 %v661, %v686
        %v758 = vmul.f32 %v662, %v696
        %v759 = vmul.f32 %v663, %v706
        %v760 = vmul.f32 %v664, %v716
        %v761 = vmul.f32 %v665, %v726
        %v762 = vmul.f32 %v666, %v736
        %v763 = vmul.f32 %v667, %v746
        %v764 = vmul.f32 %v668, %v756
        %v765 = vld [vmem:[%s6] sm:$0x1]
        %v767 = vperm.slane %v765, 0
        %v769 = vmul.f32 %v757, %v767
        %v770 = vmul.f32 %v758, %v767
        %v771 = vmul.f32 %v759, %v767
        %v772 = vmul.f32 %v760, %v767
        %v773 = vmul.f32 %v761, %v767
        %v774 = vmul.f32 %v762, %v767
        %v775 = vmul.f32 %v763, %v767
        %v776 = vmul.f32 %v764, %v767
        %v777 = vld [vmem:[%s7] sm:$0x1]
        %v779 = vperm.slane %v777, 0
        %v781 = vadd.f32 %v769, %v779
        %v782 = vadd.f32 %v770, %v779
        %v783 = vadd.f32 %v771, %v779
        %v784 = vadd.f32 %v772, %v779
        %v785 = vadd.f32 %v773, %v779
        %v786 = vadd.f32 %v774, %v779
        %v787 = vadd.f32 %v775, %v779
        %v788 = vadd.f32 %v776, %v779
        %v789 = vxor.u32 %v781, 2147483648
        %v790 = vxor.u32 %v782, 2147483648
        %v791 = vxor.u32 %v783, 2147483648
        %v792 = vxor.u32 %v784, 2147483648
        %v793 = vxor.u32 %v785, 2147483648
        %v794 = vxor.u32 %v786, 2147483648
        %v795 = vxor.u32 %v787, 2147483648
        %v796 = vxor.u32 %v788, 2147483648
        %v797 = vmul.f32 %v789, 1.442695
        %v798 = vpow.pop %v797
        %v799 = vmul.f32 %v790, 1.442695
        %v800 = vpow.pop %v799
        %v801 = vmul.f32 %v791, 1.442695
        %v802 = vpow.pop %v801
        %v803 = vmul.f32 %v792, 1.442695
        %v804 = vpow.pop %v803
        %v805 = vmul.f32 %v793, 1.442695
        %v806 = vpow.pop %v805
        %v807 = vmul.f32 %v794, 1.442695
        %v808 = vpow.pop %v807
        %v809 = vmul.f32 %v795, 1.442695
        %v810 = vpow.pop %v809
        %v811 = vmul.f32 %v796, 1.442695
        %v812 = vpow.pop %v811
        %v813 = vadd.f32 %v798, 1.0
        %v814 = vadd.f32 %v800, 1.0
        %v815 = vadd.f32 %v802, 1.0
        %v816 = vadd.f32 %v804, 1.0
        %v817 = vadd.f32 %v806, 1.0
        %v818 = vadd.f32 %v808, 1.0
        %v819 = vadd.f32 %v810, 1.0
        %v820 = vadd.f32 %v812, 1.0
        %v821 = vrcp.pop %v813
        %v822 = vmul.f32 %v813, %v821
        %v823 = vsub.f32 1.0, %v822
        %v824 = vmul.f32 %v821, %v823
        %v825 = vadd.f32 %v821, %v824
        %vm826 = vweird.f32 %v813
        %vm827 = vweird.f32 %v821
        %vm828 = vmor %vm826, %vm827
        %v829 = vsel %vm828, %v821, %v825
        %v830 = vand.u32 2147483647, %v813
        %vm831 = vcmp.eq.f32.partialorder %v830, 8.507059e+37
        %v832 = vand.u32 %v813, 2147483648
        %v833 = vor.u32 1.1754944e-38, %v832
        %v834 = vsel %vm831, %v833, %v829
        %v835 = vmul.f32 1.0, %v834
        %v836 = vrcp.pop %v814
        %v837 = vmul.f32 %v814, %v836
        %v838 = vsub.f32 1.0, %v837
        %v839 = vmul.f32 %v836, %v838
        %v840 = vadd.f32 %v836, %v839
        %vm841 = vweird.f32 %v814
        %vm842 = vweird.f32 %v836
        %vm843 = vmor %vm841, %vm842
        %v844 = vsel %vm843, %v836, %v840
        %v845 = vand.u32 2147483647, %v814
        %vm846 = vcmp.eq.f32.partialorder %v845, 8.507059e+37
        %v847 = vand.u32 %v814, 2147483648
        %v848 = vor.u32 1.1754944e-38, %v847
        %v849 = vsel %vm846, %v848, %v844
        %v850 = vmul.f32 1.0, %v849
        %v851 = vrcp.pop %v815
        %v852 = vmul.f32 %v815, %v851
        %v853 = vsub.f32 1.0, %v852
        %v854 = vmul.f32 %v851, %v853
        %v855 = vadd.f32 %v851, %v854
        %vm856 = vweird.f32 %v815
        %vm857 = vweird.f32 %v851
        %vm858 = vmor %vm856, %vm857
        %v859 = vsel %vm858, %v851, %v855
        %v860 = vand.u32 2147483647, %v815
        %vm861 = vcmp.eq.f32.partialorder %v860, 8.507059e+37
        %v862 = vand.u32 %v815, 2147483648
        %v863 = vor.u32 1.1754944e-38, %v862
        %v864 = vsel %vm861, %v863, %v859
        %v865 = vmul.f32 1.0, %v864
        %v866 = vrcp.pop %v816
        %v867 = vmul.f32 %v816, %v866
        %v868 = vsub.f32 1.0, %v867
        %v869 = vmul.f32 %v866, %v868
        %v870 = vadd.f32 %v866, %v869
        %vm871 = vweird.f32 %v816
        %vm872 = vweird.f32 %v866
        %vm873 = vmor %vm871, %vm872
        %v874 = vsel %vm873, %v866, %v870
        %v875 = vand.u32 2147483647, %v816
        %vm876 = vcmp.eq.f32.partialorder %v875, 8.507059e+37
        %v877 = vand.u32 %v816, 2147483648
        %v878 = vor.u32 1.1754944e-38, %v877
        %v879 = vsel %vm876, %v878, %v874
        %v880 = vmul.f32 1.0, %v879
        %v881 = vrcp.pop %v817
        %v882 = vmul.f32 %v817, %v881
        %v883 = vsub.f32 1.0, %v882
        %v884 = vmul.f32 %v881, %v883
        %v885 = vadd.f32 %v881, %v884
        %vm886 = vweird.f32 %v817
        %vm887 = vweird.f32 %v881
        %vm888 = vmor %vm886, %vm887
        %v889 = vsel %vm888, %v881, %v885
        %v890 = vand.u32 2147483647, %v817
        %vm891 = vcmp.eq.f32.partialorder %v890, 8.507059e+37
        %v892 = vand.u32 %v817, 2147483648
        %v893 = vor.u32 1.1754944e-38, %v892
        %v894 = vsel %vm891, %v893, %v889
        %v895 = vmul.f32 1.0, %v894
        %v896 = vrcp.pop %v818
        %v897 = vmul.f32 %v818, %v896
        %v898 = vsub.f32 1.0, %v897
        %v899 = vmul.f32 %v896, %v898
        %v900 = vadd.f32 %v896, %v899
        %vm901 = vweird.f32 %v818
        %vm902 = vweird.f32 %v896
        %vm903 = vmor %vm901, %vm902
        %v904 = vsel %vm903, %v896, %v900
        %v905 = vand.u32 2147483647, %v818
        %vm906 = vcmp.eq.f32.partialorder %v905, 8.507059e+37
        %v907 = vand.u32 %v818, 2147483648
        %v908 = vor.u32 1.1754944e-38, %v907
        %v909 = vsel %vm906, %v908, %v904
        %v910 = vmul.f32 1.0, %v909
        %v911 = vrcp.pop %v819
        %v912 = vmul.f32 %v819, %v911
        %v913 = vsub.f32 1.0, %v912
        %v914 = vmul.f32 %v911, %v913
        %v915 = vadd.f32 %v911, %v914
        %vm916 = vweird.f32 %v819
        %vm917 = vweird.f32 %v911
        %vm918 = vmor %vm916, %vm917
        %v919 = vsel %vm918, %v911, %v915
        %v920 = vand.u32 2147483647, %v819
        %vm921 = vcmp.eq.f32.partialorder %v920, 8.507059e+37
        %v922 = vand.u32 %v819, 2147483648
        %v923 = vor.u32 1.1754944e-38, %v922
        %v924 = vsel %vm921, %v923, %v919
        %v925 = vmul.f32 1.0, %v924
        %v926 = vrcp.pop %v820
        %v927 = vmul.f32 %v820, %v926
        %v928 = vsub.f32 1.0, %v927
        %v929 = vmul.f32 %v926, %v928
        %v930 = vadd.f32 %v926, %v929
        %vm931 = vweird.f32 %v820
        %vm932 = vweird.f32 %v926
        %vm933 = vmor %vm931, %vm932
        %v934 = vsel %vm933, %v926, %v930
        %v935 = vand.u32 2147483647, %v820
        %vm936 = vcmp.eq.f32.partialorder %v935, 8.507059e+37
        %v937 = vand.u32 %v820, 2147483648
        %v938 = vor.u32 1.1754944e-38, %v937
        %v939 = vsel %vm936, %v938, %v934
        %v940 = vmul.f32 1.0, %v939
        %v941 = vmul.f32 %v835, %v351
        %v942 = vmul.f32 %v850, %v352
        %v943 = vmul.f32 %v865, %v353
        %v944 = vmul.f32 %v880, %v354
        %v945 = vmul.f32 %v895, %v355
        %v946 = vmul.f32 %v910, %v356
        %v947 = vmul.f32 %v925, %v357
        %v948 = vmul.f32 %v940, %v358
        %949 = vst [vmem:[%s341] sm:$0xff] %v941
        %950 = vst [vmem:[%s341 + $0x8] sm:$0xff] %v942
        %951 = vst [vmem:[%s341 + $0x10] sm:$0xff] %v943
        %952 = vst [vmem:[%s341 + $0x18] sm:$0xff] %v944
        %953 = vst [vmem:[%s341 + $0x20] sm:$0xff] %v945
        %954 = vst [vmem:[%s341 + $0x28] sm:$0xff] %v946
        %955 = vst [vmem:[%s341 + $0x30] sm:$0xff] %v947
        %956 = vst [vmem:[%s341 + $0x38] sm:$0xff] %v948
        %s957 = sand.u32 %s211, 1
        %s958 = scalar_lea.sflag [#allocation4], %s957
        %s959 = sand.u32 %s211, 1
        %s960 = smul.addr %s959, 64
        %s961 = scalar_lea.vmem [#allocation5], %s960
        // Predicated region
        $region57: #{tpu_custom_call.1} parent=51 // pred_check
          %p962 = pneg %p221
        $region58: #{tpu_custom_call.1} parent=51 // pred_check_branch
          %964 = sbr.rel (%p962) target = $region60
        $region59: #{tpu_custom_call.1} parent=51 // pred_region
          %s965 = smul.u32 8, %s25
          %967 = vsyncadd %s958, 0
          %s968 = smul.addr %s965, 8
          %s969 = scalar_lea.hbm %s8, %s968
          %s970 = sshll.u32 %s961, 4
          %s971 = int_to_ptr.vmem [resolvable:$true] %s970
          %s972 = sshll.u32 %s969, 4
          %s973 = int_to_ptr.hbm [resolvable:$true] %s972
          %978 = dma.vmem_to_hbm [thread:$0]  %s971, 1024, %s973, %s958, 128, 128, 8
        $region60: #{tpu_custom_call.1} parent=51 // pred_fallthru
          _
      $region52: #{tpu_custom_call.1} parent=5 // pred_fallthru
        _
      %p979 = scmp.le.s32.totalorder 2, %s20
      // Predicated region
      $region61: #{tpu_custom_call.1} parent=5 // pred_check
        %p980 = pneg %p979
      $region62: #{tpu_custom_call.1} parent=5 // pred_check_branch
        %982 = sbr.rel (%p980) target = $region64
      $region63: #{tpu_custom_call.1} parent=5 // pred_region
        %s983 = ssub.s32 %s20, 2
        // Predicated region
        $region65: #{tpu_custom_call.1} parent=63 // pred_check
          %p984 = pneg %p227
        $region66: #{tpu_custom_call.1} parent=63 // pred_check_branch
          %986 = sbr.rel (%p984) target = $region68
        $region67: #{tpu_custom_call.1} parent=63 // pred_region
          %s987 = sand.u32 %s212, 1
          %s988 = scalar_lea.sflag [#allocation4], %s987
          %s989 = sand.u32 %s212, 1
          %s990 = smul.addr %s989, 64
          %s991 = scalar_lea.vmem [#allocation5], %s990
          %993 = dma.done %s988, 1024
        $region68: #{tpu_custom_call.1} parent=63 // pred_fallthru
          _
      $region64: #{tpu_custom_call.1} parent=5 // pred_fallthru
        _
    $region6: #{tpu_custom_call.1} parent=1 // loop_footer
      %s24 = sadd.s32 1, %s20
    $region7: #{tpu_custom_call.1} parent=1 // loop_footer_branch
      %19 = sbr.rel target = $region3
    $region8: #{tpu_custom_call.1} parent=1 // loop_exit
      _
    %994 = vsyncpa [#allocation3], 1
    %s995 = scalar_lea.sflag [#allocation3], 1
    %996 = vsyncpa %s995, 1
    %997 = vsyncpa [#allocation4], 1
    %s998 = scalar_lea.sflag [#allocation4], 1
    %999 = vsyncpa %s998, 1

// kernel: tpu_custom_call.1
$region0: #{tpu_custom_call.1}
  #allocation0 [shape = 'u32[]', space=smem, size = 0x4, offset = 0x4, fixed_abs, tag = 'smem constant byte address 0x4 - core index']
  #allocation1 [shape = 'u32[72,128]{1,0:T(1,128)}', space=vmem, size = 0x9000, scoped, tag = 'internal scratch']
  %s0 = inlined_call_operand.hbm [shape: f32[128,128], index: 0, kind: input, shape index: {}]
  %s1 = inlined_call_operand.vmem [shape: bf16[128,128], index: 1, kind: input, shape index: {}]
  %s2 = inlined_call_operand.vmem [shape: bf16[128,32], index: 2, kind: input, shape index: {}]
  %s3 = inlined_call_operand.vmem [shape: f32[1,32], index: 3, kind: input, shape index: {}]
  %s4 = inlined_call_operand.vmem [shape: bf16[32,128], index: 4, kind: input, shape index: {}]
  %s5 = inlined_call_operand.vmem [shape: f32[1,128], index: 5, kind: input, shape index: {}]
  %s6 = inlined_call_operand.vmem [shape: f32[1,128], index: 6, kind: input, shape index: {}]
  %s7 = inlined_call_operand.vmem [shape: f32[1,128], index: 7, kind: input, shape index: {}]
  %s8 = inlined_call_operand.hbm [shape: f32[128,128], index: 8, kind: output, shape index: {}]
  %s9 = sld [smem:[#allocation0]]
  $region69: #{tpu_custom_call.1} parent=0
    _
  %s11 = ssub.s32 1, %s9
  %s12 = scalar_select 0, %s11, %s9
  $region1: #{tpu_custom_call.1} parent=0
    #allocation2 [shape = 'u8[65536]{0}', space=vmem, size = 0x10000, scoped, tag = 'input window, operand 0']
    #allocation3 [shape = 's32[2]{0}', space=sflag, size = 0x8, scoped, tag = 'scoped memory for tpu_custom_call.1']
    #allocation4 [shape = 's32[2]{0}', space=sflag, size = 0x8, scoped, tag = 'scoped memory for tpu_custom_call.1']
    #allocation5 [shape = 'u8[65536]{0}', space=vmem, size = 0x10000, scoped, tag = 'output window, operand 0']
    %13 = vsyncpa [#allocation3], 0
    %s14 = scalar_lea.sflag [#allocation3], 1
    %15 = vsyncpa %s14, 0
    %16 = vsyncpa [#allocation4], 0
    %s17 = scalar_lea.sflag [#allocation4], 1
    %18 = vsyncpa %s17, 0
    loop: start=0, step=1, limit=4
    $region2: #{tpu_custom_call.1} parent=1 // loop_pre_header
      _
    $region3: #{tpu_custom_call.1} parent=1 // loop_header
      %s20 = sphi 0, %s24
      %p21 = scmp.ge.s32.totalorder %s20, 4
      %s30 = sphi 0, %s32
      %s33 = sphi 0, %s30
      %s34 = sphi 0, %s33
      %s50 = sphi 0, %s34
      %s56 = sphi 0, %s58
      %s59 = sphi 0, %s56
      %s60 = sphi 0, %s59
      %s76 = sphi 0, %s60
      %s80 = sphi 0, %s80
      %s82 = sphi 0, %s80
      %s83 = sphi 0, %s82
      %s97 = sphi 0, %s83
      %s101 = sphi 0, %s101
      %s103 = sphi 0, %s101
      %s104 = sphi 0, %s103
      %s118 = sphi 0, %s104
      %s122 = sphi 0, %s122
      %s124 = sphi 0, %s122
      %s125 = sphi 0, %s124
      %s139 = sphi 0, %s125
      %s143 = sphi 0, %s143
      %s145 = sphi 0, %s143
      %s146 = sphi 0, %s145
      %s160 = sphi 0, %s146
      %s164 = sphi 0, %s164
      %s166 = sphi 0, %s164
      %s167 = sphi 0, %s166
      %s181 = sphi 0, %s167
      %s185 = sphi 0, %s185
      %s187 = sphi 0, %s185
      %s188 = sphi 0, %s187
      %s202 = sphi 0, %s188
      %s208 = sphi 0, %s210
      %s211 = sphi 0, %s208
      %s212 = sphi 0, %s211
      %s228 = sphi 0, %s212
    $region4: #{tpu_custom_call.1} parent=1 // loop_header_branch
      %23 = sbr.rel (%p21) target = $region8
    $region5: #{tpu_custom_call.1} parent=1 // loop_body
      %s25 = ssub.s32 %s20, 1
      %s26 = ssub.s32 %s20, 2
      %s27 = sadd.s32 %s20, 1
      %s28 = ssub.s32 %s20, %s27
      %p29 = scmp.eq.s32.totalorder %s28, 0
      %s31 = sadd.s32 %s30, 1
      %s32 = scalar_select %p29, %s30, %s31
      %p35 = pneg %p29
      %p36 = scmp.eq.s32.totalorder %s20, 1
      %p37 = por %p35, %p36
      %p38 = scmp.ne.s32.totalorder %s30, %s33
      %p39 = scmp.eq.s32.totalorder %s20, 0
      %p40 = por %p38, %p39
      %p41 = scmp.ne.s32.totalorder %s30, %s33
      %p42 = scmp.eq.s32.totalorder %s25, 1
      %p43 = por %p41, %p42
      %p44 = scmp.ne.s32.totalorder %s33, %s34
      %p45 = scmp.eq.s32.totalorder %s25, 0
      %p46 = por %p44, %p45
      %p47 = scmp.ne.s32.totalorder %s33, %s34
      %p48 = scmp.eq.s32.totalorder %s26, 1
      %p49 = por %p47, %p48
      %p51 = scmp.ne.s32.totalorder %s34, %s50
      %p52 = scmp.eq.s32.totalorder %s26, 0
      %p53 = por %p51, %p52
      %s54 = ssub.s32 %s20, %s27
      %p55 = scmp.eq.s32.totalorder %s54, 0
      %s57 = sadd.s32 %s56, 1
      %s58 = scalar_select %p55, %s56, %s57
      %p61 = pneg %p55
      %p62 = scmp.eq.s32.totalorder %s20, 1
      %p63 = por %p61, %p62
      %p64 = scmp.ne.s32.totalorder %s56, %s59
      %p65 = scmp.eq.s32.totalorder %s20, 0
      %p66 = por %p64, %p65
      %p67 = scmp.ne.s32.totalorder %s56, %s59
      %p68 = scmp.eq.s32.totalorder %s25, 1
      %p69 = por %p67, %p68
      %p70 = scmp.ne.s32.totalorder %s59, %s60
      %p71 = scmp.eq.s32.totalorder %s25, 0
      %p72 = por %p70, %p71
      %p73 = scmp.ne.s32.totalorder %s59, %s60
      %p74 = scmp.eq.s32.totalorder %s26, 1
      %p75 = por %p73, %p74
      %p77 = scmp.ne.s32.totalorder %s60, %s76
      %p78 = scmp.eq.s32.totalorder %s26, 0
      %p79 = por %p77, %p78
      %s81 = sadd.s32 %s80, 1
      %p84 = scmp.eq.s32.totalorder %s20, 1
      %p85 = scmp.ne.s32.totalorder %s80, %s82
      %p86 = scmp.eq.s32.totalorder %s20, 0
      %p87 = por %p85, %p86
      %p88 = scmp.ne.s32.totalorder %s80, %s82
      %p89 = scmp.eq.s32.totalorder %s25, 1
      %p90 = por %p88, %p89
      %p91 = scmp.ne.s32.totalorder %s82, %s83
      %p92 = scmp.eq.s32.totalorder %s25, 0
      %p93 = por %p91, %p92
      %p94 = scmp.ne.s32.totalorder %s82, %s83
      %p95 = scmp.eq.s32.totalorder %s26, 1
      %p96 = por %p94, %p95
      %p98 = scmp.ne.s32.totalorder %s83, %s97
      %p99 = scmp.eq.s32.totalorder %s26, 0
      %p100 = por %p98, %p99
      %s102 = sadd.s32 %s101, 1
      %p105 = scmp.eq.s32.totalorder %s20, 1
      %p106 = scmp.ne.s32.totalorder %s101, %s103
      %p107 = scmp.eq.s32.totalorder %s20, 0
      %p108 = por %p106, %p107
      %p109 = scmp.ne.s32.totalorder %s101, %s103
      %p110 = scmp.eq.s32.totalorder %s25, 1
      %p111 = por %p109, %p110
      %p112 = scmp.ne.s32.totalorder %s103, %s104
      %p113 = scmp.eq.s32.totalorder %s25, 0
      %p114 = por %p112, %p113
      %p115 = scmp.ne.s32.totalorder %s103, %s104
      %p116 = scmp.eq.s32.totalorder %s26, 1
      %p117 = por %p115, %p116
      %p119 = scmp.ne.s32.totalorder %s104, %s118
      %p120 = scmp.eq.s32.totalorder %s26, 0
      %p121 = por %p119, %p120
      %s123 = sadd.s32 %s122, 1
      %p126 = scmp.eq.s32.totalorder %s20, 1
      %p127 = scmp.ne.s32.totalorder %s122, %s124
      %p128 = scmp.eq.s32.totalorder %s20, 0
      %p129 = por %p127, %p128
      %p130 = scmp.ne.s32.totalorder %s122, %s124
      %p131 = scmp.eq.s32.totalorder %s25, 1
      %p132 = por %p130, %p131
      %p133 = scmp.ne.s32.totalorder %s124, %s125
      %p134 = scmp.eq.s32.totalorder %s25, 0
      %p135 = por %p133, %p134
      %p136 = scmp.ne.s32.totalorder %s124, %s125
      %p137 = scmp.eq.s32.totalorder %s26, 1
      %p138 = por %p136, %p137
      %p140 = scmp.ne.s32.totalorder %s125, %s139
      %p141 = scmp.eq.s32.totalorder %s26, 0
      %p142 = por %p140, %p141
      %s144 = sadd.s32 %s143, 1
      %p147 = scmp.eq.s32.totalorder %s20, 1
      %p148 = scmp.ne.s32.totalorder %s143, %s145
      %p149 = scmp.eq.s32.totalorder %s20, 0
      %p150 = por %p148, %p149
      %p151 = scmp.ne.s32.totalorder %s143, %s145
      %p152 = scmp.eq.s32.totalorder %s25, 1
      %p153 = por %p151, %p152
      %p154 = scmp.ne.s32.totalorder %s145, %s146
      %p155 = scmp.eq.s32.totalorder %s25, 0
      %p156 = por %p154, %p155
      %p157 = scmp.ne.s32.totalorder %s145, %s146
      %p158 = scmp.eq.s32.totalorder %s26, 1
      %p159 = por %p157, %p158
      %p161 = scmp.ne.s32.totalorder %s146, %s160
      %p162 = scmp.eq.s32.totalorder %s26, 0
      %p163 = por %p161, %p162
      %s165 = sadd.s32 %s164, 1
      %p168 = scmp.eq.s32.totalorder %s20, 1
      %p169 = scmp.ne.s32.totalorder %s164, %s166
      %p170 = scmp.eq.s32.totalorder %s20, 0
      %p171 = por %p169, %p170
      %p172 = scmp.ne.s32.totalorder %s164, %s166
      %p173 = scmp.eq.s32.totalorder %s25, 1
      %p174 = por %p172, %p173
      %p175 = scmp.ne.s32.totalorder %s166, %s167
      %p176 = scmp.eq.s32.totalorder %s25, 0
      %p177 = por %p175, %p176
      %p178 = scmp.ne.s32.totalorder %s166, %s167
      %p179 = scmp.eq.s32.totalorder %s26, 1
      %p180 = por %p178, %p179
      %p182 = scmp.ne.s32.totalorder %s167, %s181
      %p183 = scmp.eq.s32.totalorder %s26, 0
      %p184 = por %p182, %p183
      %s186 = sadd.s32 %s185, 1
      %p189 = scmp.eq.s32.totalorder %s20, 1
      %p190 = scmp.ne.s32.totalorder %s185, %s187
      %p191 = scmp.eq.s32.totalorder %s20, 0
      %p192 = por %p190, %p191
      %p193 = scmp.ne.s32.totalorder %s185, %s187
      %p194 = scmp.eq.s32.totalorder %s25, 1
      %p195 = por %p193, %p194
      %p196 = scmp.ne.s32.totalorder %s187, %s188
      %p197 = scmp.eq.s32.totalorder %s25, 0
      %p198 = por %p196, %p197
      %p199 = scmp.ne.s32.totalorder %s187, %s188
      %p200 = scmp.eq.s32.totalorder %s26, 1
      %p201 = por %p199, %p200
      %p203 = scmp.ne.s32.totalorder %s188, %s202
      %p204 = scmp.eq.s32.totalorder %s26, 0
      %p205 = por %p203, %p204
      %s206 = ssub.s32 %s20, %s27
      %p207 = scmp.eq.s32.totalorder %s206, 0
      %s209 = sadd.s32 %s208, 1
      %s210 = scalar_select %p207, %s208, %s209
      %p213 = pneg %p207
      %p214 = scmp.eq.s32.totalorder %s20, 1
      %p215 = por %p213, %p214
      %p216 = scmp.ne.s32.totalorder %s208, %s211
      %p217 = scmp.eq.s32.totalorder %s20, 0
      %p218 = por %p216, %p217
      %p219 = scmp.ne.s32.totalorder %s208, %s211
      %p220 = scmp.eq.s32.totalorder %s25, 1
      %p221 = por %p219, %p220
      %p222 = scmp.ne.s32.totalorder %s211, %s212
      %p223 = scmp.eq.s32.totalorder %s25, 0
      %p224 = por %p222, %p223
      %p225 = scmp.ne.s32.totalorder %s211, %s212
      %p226 = scmp.eq.s32.totalorder %s26, 1
      %p227 = por %p225, %p226
      %p229 = scmp.ne.s32.totalorder %s212, %s228
      %p230 = scmp.eq.s32.totalorder %s26, 0
      %p231 = por %p229, %p230
      %p232 = scmp.le.s32.totalorder 1, %s20
      %p233 = scmp.lt.s32.totalorder %s20, 3
      %p234 = pnand %p232, %p233
      %p235 = pneg %p234
      // Predicated region
      $region9: #{tpu_custom_call.1} parent=5 // pred_check
        _
      $region10: #{tpu_custom_call.1} parent=5 // pred_check_branch
        %237 = sbr.rel (%p234) target = $region12
      $region11: #{tpu_custom_call.1} parent=5 // pred_region
        %s238 = ssub.s32 %s20, 1
        // Predicated region
        $region13: #{tpu_custom_call.1} parent=11 // pred_check
          %p239 = pneg %p93
        $region14: #{tpu_custom_call.1} parent=11 // pred_check_branch
          %241 = sbr.rel (%p239) target = $region16
        $region15: #{tpu_custom_call.1} parent=11 // pred_region
          _
        $region16: #{tpu_custom_call.1} parent=11 // pred_fallthru
          _
        // Predicated region
        $region17: #{tpu_custom_call.1} parent=11 // pred_check
          %p242 = pneg %p114
        $region18: #{tpu_custom_call.1} parent=11 // pred_check_branch
          %244 = sbr.rel (%p242) target = $region20
        $region19: #{tpu_custom_call.1} parent=11 // pred_region
          _
        $region20: #{tpu_custom_call.1} parent=11 // pred_fallthru
          _
        // Predicated region
        $region21: #{tpu_custom_call.1} parent=11 // pred_check
          %p245 = pneg %p135
        $region22: #{tpu_custom_call.1} parent=11 // pred_check_branch
          %247 = sbr.rel (%p245) target = $region24
        $region23: #{tpu_custom_call.1} parent=11 // pred_region
          _
        $region24: #{tpu_custom_call.1} parent=11 // pred_fallthru
          _
        // Predicated region
        $region25: #{tpu_custom_call.1} parent=11 // pred_check
          %p248 = pneg %p156
        $region26: #{tpu_custom_call.1} parent=11 // pred_check_branch
          %250 = sbr.rel (%p248) target = $region28
        $region27: #{tpu_custom_call.1} parent=11 // pred_region
          _
        $region28: #{tpu_custom_call.1} parent=11 // pred_fallthru
          _
        // Predicated region
        $region29: #{tpu_custom_call.1} parent=11 // pred_check
          %p251 = pneg %p177
        $region30: #{tpu_custom_call.1} parent=11 // pred_check_branch
          %253 = sbr.rel (%p251) target = $region32
        $region31: #{tpu_custom_call.1} parent=11 // pred_region
          _
        $region32: #{tpu_custom_call.1} parent=11 // pred_fallthru
          _
        // Predicated region
        $region33: #{tpu_custom_call.1} parent=11 // pred_check
          %p254 = pneg %p198
        $region34: #{tpu_custom_call.1} parent=11 // pred_check_branch
          %256 = sbr.rel (%p254) target = $region36
        $region35: #{tpu_custom_call.1} parent=11 // pred_region
          _
        $region36: #{tpu_custom_call.1} parent=11 // pred_fallthru
          _
      $region12: #{tpu_custom_call.1} parent=5 // pred_fallthru
        _
      %p257 = scmp.lt.s32.totalorder %s20, 2
      // Predicated region
      $region37: #{tpu_custom_call.1} parent=5 // pred_check
        %p258 = pneg %p257
      $region38: #{tpu_custom_call.1} parent=5 // pred_check_branch
        %260 = sbr.rel (%p258) target = $region40
      $region39: #{tpu_custom_call.1} parent=5 // pred_region
        // Predicated region
        $region41: #{tpu_custom_call.1} parent=39 // pred_check
          %p261 = pneg %p40
        $region42: #{tpu_custom_call.1} parent=39 // pred_check_branch
          %263 = sbr.rel (%p261) target = $region44
        $region43: #{tpu_custom_call.1} parent=39 // pred_region
          %s264 = sand.u32 %s30, 1
          %s265 = scalar_lea.sflag [#allocation3], %s264
          %s266 = sand.u32 %s30, 1
          %s267 = smul.addr %s266, 64
          %s268 = scalar_lea.vmem [#allocation2], %s267
          %s269 = smul.u32 8, %s20
          %271 = vsyncadd %s265, 0
          %s272 = smul.addr %s269, 8
          %s273 = scalar_lea.hbm %s0, %s272
          %s274 = sshll.u32 %s273, 4
          %s275 = int_to_ptr.hbm [resolvable:$true] %s274
          %s276 = sshll.u32 %s268, 4
          %s277 = int_to_ptr.vmem [resolvable:$true] %s276
          %282 = dma.hbm_to_vmem [thread:$0]  %s275, 1024, %s277, %s265, 128, 128, 8
        $region44: #{tpu_custom_call.1} parent=39 // pred_fallthru
          _
        // Predicated region
        $region45: #{tpu_custom_call.1} parent=39 // pred_check
          %p283 = pneg %p66
        $region46: #{tpu_custom_call.1} parent=39 // pred_check_branch
          %285 = sbr.rel (%p283) target = $region48
        $region47: #{tpu_custom_call.1} parent=39 // pred_region
          %s286 = smul.u32 8, %s20
          %p287 = scmp.lt.s32.totalorder %s286, 15
          %s288 = scalar_select %p287, %s286, 15
          %s289 = smul.addr %s288, 4
          %s290 = scalar_lea.vmem %s1, %s289
          %s291 = smul.u32 8, %s20
        $region48: #{tpu_custom_call.1} parent=39 // pred_fallthru
          _
      $region40: #{tpu_custom_call.1} parent=5 // pred_fallthru
        _
      %p292 = scmp.le.s32.totalorder 1, %s20
      %p293 = scmp.lt.s32.totalorder %s20, 3
      %p294 = pnand %p292, %p293
      %p295 = pneg %p294
      // Predicated region
      $region49: #{tpu_custom_call.1} parent=5 // pred_check
        _
      $region50: #{tpu_custom_call.1} parent=5 // pred_check_branch
        %297 = sbr.rel (%p294) target = $region52
      $region51: #{tpu_custom_call.1} parent=5 // pred_region
        %s298 = ssub.s32 %s20, 1
        %s299 = sand.u32 %s33, 1
        %s300 = scalar_lea.sflag [#allocation3], %s299
        %s301 = sand.u32 %s33, 1
        %s302 = smul.addr %s301, 64
        %s303 = scalar_lea.vmem [#allocation2], %s302
        // Predicated region
        $region53: #{tpu_custom_call.1} parent=51 // pred_check
          %p304 = pneg %p46
        $region54: #{tpu_custom_call.1} parent=51 // pred_check_branch
          %306 = sbr.rel (%p304) target = $region56
        $region55: #{tpu_custom_call.1} parent=51 // pred_region
          %308 = dma.done %s300, 1024
        $region56: #{tpu_custom_call.1} parent=51 // pred_fallthru
          _
        %s309 = sand.u32 %s33, 1
        %s310 = scalar_lea.sflag [#allocation3], %s309
        %s311 = sand.u32 %s33, 1
        %s312 = smul.addr %s311, 64
        %s313 = scalar_lea.vmem [#allocation2], %s312
        %p314 = pneg %p46
        %p315 = pneg %p43
        %s316 = smul.u32 8, %s25
        %p317 = scmp.lt.s32.totalorder %s316, 15
        %s318 = scalar_select %p317, %s316, 15
        %s319 = smul.addr %s318, 4
        %s320 = scalar_lea.vmem %s1, %s319
        %p321 = pneg %p72
        %p322 = pneg %p69
        %p323 = pneg %p93
        %p324 = pneg %p90
        %p325 = pneg %p114
        %p326 = pneg %p111
        %p327 = pneg %p135
        %p328 = pneg %p132
        %p329 = pneg %p156
        %p330 = pneg %p153
        %p331 = pneg %p177
        %p332 = pneg %p174
        %p333 = pneg %p198
        %p334 = pneg %p195
        %p335 = pneg %p224
        %p336 = pneg %p221
        %s337 = sand.u32 %s211, 1
        %s338 = scalar_lea.sflag [#allocation4], %s337
        %s339 = sand.u32 %s211, 1
        %s340 = smul.addr %s339, 64
        %s341 = scalar_lea.vmem [#allocation5], %s340
        %s342 = smul.u32 8, %s25
        %s343 = smul.u32 8, %s25
        %p344 = scmp.lt.s32.totalorder %s343, 15
        %s345 = scalar_select %p344, %s343, 15
        %s346 = smul.addr %s345, 4
        %s347 = scalar_lea.vmem %s1, %s346
        %s348 = smul.u32 8, %s25
        %s349 = smul.u32 8, %s25
        %v351 = vld [vmem:[%s303] sm:$0xff]
        %v352 = vld [vmem:[%s303 + $0x8] sm:$0xff]
        %v353 = vld [vmem:[%s303 + $0x10] sm:$0xff]
        %v354 = vld [vmem:[%s303 + $0x18] sm:$0xff]
        %v355 = vld [vmem:[%s303 + $0x20] sm:$0xff]
        %v356 = vld [vmem:[%s303 + $0x28] sm:$0xff]
        %v357 = vld [vmem:[%s303 + $0x30] sm:$0xff]
        %v358 = vld [vmem:[%s303 + $0x38] sm:$0xff]
        %v359 = vld [vmem:[%s347] sm:$0xf]
        %v360 = vld [vmem:[%s347 + $0x4] sm:$0xf]
        %v361 = vld [vmem:[%s347 + $0x8] sm:$0xf]
        %v362 = vld [vmem:[%s347 + $0xc] sm:$0xf]
        %v363 = vld [vmem:[%s347 + $0x10] sm:$0xf]
        %v364 = vld [vmem:[%s347 + $0x14] sm:$0xf]
        %v365 = vld [vmem:[%s347 + $0x18] sm:$0xf]
        %v366 = vld [vmem:[%s347 + $0x1c] sm:$0xf]
        %v367 = vpack.c.bf16 %v351, %v351
        %v368 = vpack.c.bf16 %v352, %v352
        %v369 = vpack.c.bf16 %v353, %v353
        %v370 = vpack.c.bf16 %v354, %v354
        %v371 = vpack.c.bf16 %v355, %v355
        %v372 = vpack.c.bf16 %v356, %v356
        %v373 = vpack.c.bf16 %v357, %v357
        %v374 = vpack.c.bf16 %v358, %v358
        %v375 = vunpack.c.l.bf16 %v367
        %v376 = vunpack.c.l.bf16 %v368
        %v377 = vunpack.c.l.bf16 %v369
        %v378 = vunpack.c.l.bf16 %v370
        %v379 = vunpack.c.l.bf16 %v371
        %v380 = vunpack.c.l.bf16 %v372
        %v381 = vunpack.c.l.bf16 %v373
        %v382 = vunpack.c.l.bf16 %v374
        %v383 = vunpack.c.l.bf16 %v359
        %v384 = vunpack.c.l.bf16 %v360
        %v385 = vunpack.c.l.bf16 %v361
        %v386 = vunpack.c.l.bf16 %v362
        %v387 = vunpack.c.l.bf16 %v363
        %v388 = vunpack.c.l.bf16 %v364
        %v389 = vunpack.c.l.bf16 %v365
        %v390 = vunpack.c.l.bf16 %v366
        %v391 = vmul.f32 %v375, %v383
        %v392 = vmul.f32 %v376, %v384
        %v393 = vmul.f32 %v377, %v385
        %v394 = vmul.f32 %v378, %v386
        %v395 = vmul.f32 %v379, %v387
        %v396 = vmul.f32 %v380, %v388
        %v397 = vmul.f32 %v381, %v389
        %v398 = vmul.f32 %v382, %v390
        %v399 = vpack.c.bf16 %v392, %v391
        %v400 = vpack.c.bf16 %v394, %v393
        %v401 = vpack.c.bf16 %v396, %v395
        %v402 = vpack.c.bf16 %v398, %v397
        %v403 = vld [vmem:[%s2] sm:$0xf]
        %v404 = vld [vmem:[%s2 + $0x4] sm:$0xf]
        %v405 = vld [vmem:[%s2 + $0x8] sm:$0xf]
        %v406 = vld [vmem:[%s2 + $0xc] sm:$0xf]
        %v407 = vld [vmem:[%s2 + $0x10] sm:$0xf]
        %v408 = vld [vmem:[%s2 + $0x14] sm:$0xf]
        %v409 = vld [vmem:[%s2 + $0x18] sm:$0xf]
        %v410 = vld [vmem:[%s2 + $0x1c] sm:$0xf]
        %v411 = vld [vmem:[%s2 + $0x20] sm:$0xf]
        %v412 = vld [vmem:[%s2 + $0x24] sm:$0xf]
        %v413 = vld [vmem:[%s2 + $0x28] sm:$0xf]
        %v414 = vld [vmem:[%s2 + $0x2c] sm:$0xf]
        %v415 = vld [vmem:[%s2 + $0x30] sm:$0xf]
        %v416 = vld [vmem:[%s2 + $0x34] sm:$0xf]
        %v417 = vld [vmem:[%s2 + $0x38] sm:$0xf]
        %v418 = vld [vmem:[%s2 + $0x3c] sm:$0xf]
        %v419 = vld [vmem:[%s3] sm:$0x1]
        %v421 = vperm.slane %v419, 0
        %v439 = vunpack.c.l.b16 %v403
        %v440 = vunpack.c.l.b16 %v404
        %v441 = vunpack.c.l.b16 %v405
        %v442 = vunpack.c.l.b16 %v406
        %v443 = vunpack.c.l.b16 %v407
        %v444 = vunpack.c.l.b16 %v408
        %v445 = vunpack.c.l.b16 %v409
        %v446 = vunpack.c.l.b16 %v410
        %v447 = vunpack.c.l.b16 %v411
        %v448 = vunpack.c.l.b16 %v412
        %v449 = vunpack.c.l.b16 %v413
        %v450 = vunpack.c.l.b16 %v414
        %v451 = vunpack.c.l.b16 %v415
        %v452 = vunpack.c.l.b16 %v416
        %v453 = vunpack.c.l.b16 %v417
        %v454 = vunpack.c.l.b16 %v418
        %v455 = vpack.c.b16 %v440, %v439
        %v456 = vpack.c.b16 %v442, %v441
        %v457 = vpack.c.b16 %v444, %v443
        %v458 = vpack.c.b16 %v446, %v445
        %v459 = vpack.c.b16 %v448, %v447
        %v460 = vpack.c.b16 %v450, %v449
        %v461 = vpack.c.b16 %v452, %v451
        %v462 = vpack.c.b16 %v454, %v453
        %471 = vmatpush.bf16.msra.mxu0 %v462
        %472 = vmatpush.bf16.msra.mxu0 %v461
        %473 = vmatpush.bf16.msra.mxu0 %v460
        %474 = vmatpush.bf16.msra.mxu0 %v459
        %475 = vmatpush.bf16.msra.mxu0 %v458
        %476 = vmatpush.bf16.msra.mxu0 %v457
        %477 = vmatpush.bf16.msra.mxu0 %v456
        %478 = vmatpush.bf16.msra.mxu0 %v455
        %479 = vmatmul.bf16.gmra.mxu0 %v399
        %v480 = vpop.f32.mrf.mxu0
        %v481 = vadd.f32 %v421, %v480
        %v482 = vpop.f32.mrf.mxu0
        %v483 = vadd.f32 %v421, %v482
        %484 = vmatmul.bf16.gmra.mxu0 %v400
        %v485 = vpop.f32.mrf.mxu0
        %v486 = vadd.f32 %v421, %v485
        %v487 = vpop.f32.mrf.mxu0
        %v488 = vadd.f32 %v421, %v487
        %489 = vmatmul.bf16.gmra.mxu0 %v401
        %v490 = vpop.f32.mrf.mxu0
        %v491 = vadd.f32 %v421, %v490
        %v492 = vpop.f32.mrf.mxu0
        %v493 = vadd.f32 %v421, %v492
        %494 = vmatmul.bf16.gmra.mxu0 %v402
        %v495 = vpop.f32.mrf.mxu0
        %v496 = vadd.f32 %v421, %v495
        %v497 = vpop.f32.mrf.mxu0
        %v498 = vadd.f32 %v421, %v497
        %499 = vdwg.mxu0
        %v500 = vmax.f32 %v481, 0.0
        %v501 = vmax.f32 %v483, 0.0
        %v502 = vmax.f32 %v486, 0.0
        %v503 = vmax.f32 %v488, 0.0
        %v504 = vmax.f32 %v491, 0.0
        %v505 = vmax.f32 %v493, 0.0
        %v506 = vmax.f32 %v496, 0.0
        %v507 = vmax.f32 %v498, 0.0
        %v508 = vpack.c.bf16 %v501, %v500
        %v509 = vpack.c.bf16 %v503, %v502
        %v510 = vpack.c.bf16 %v505, %v504
        %v511 = vpack.c.bf16 %v507, %v506
        %v512 = vld [vmem:[%s4] sm:$0xf]
        %v513 = vld [vmem:[%s4 + $0x4] sm:$0xf]
        %v514 = vld [vmem:[%s4 + $0x8] sm:$0xf]
        %v515 = vld [vmem:[%s4 + $0xc] sm:$0xf]
        %v516 = vld [vmem:[%s5] sm:$0x1]
        %v518 = vperm.slane %v516, 0
        %v524 = vunpack.c.l.b16 %v512
        %v525 = vunpack.c.l.b16 %v513
        %v526 = vunpack.c.l.b16 %v514
        %v527 = vunpack.c.l.b16 %v515
        %v528 = vpack.c.b16 %v525, %v524
        %v529 = vpack.c.b16 %v527, %v526
        %vm532 = vcmask 261120
        %v534 = vsel %vm532, %v508, 0
        %v537 = vsel %vm532, %v509, 0
        %v540 = vsel %vm532, %v510, 0
        %v543 = vsel %vm532, %v511, 0
        %545 = vmatpush.bf16.msra.mxu0 0
        %546 = vmatpush.bf16.msra.mxu0 0
        %547 = vmatpush.bf16.msra.mxu0 0
        %548 = vmatpush.bf16.msra.mxu0 0
        %549 = vmatpush.bf16.msra.mxu0 0
        %550 = vmatpush.bf16.msra.mxu0 0
        %551 = vmatpush.bf16.msra.mxu0 %v529
        %552 = vmatpush.bf16.msra.mxu0 %v528
        %553 = vmatmul.bf16.gmra.mxu0 %v534
        %v554 = vpop.f32.mrf.mxu0
        %v555 = vadd.f32 %v518, %v554
        %v556 = vpop.f32.mrf.mxu0
        %v557 = vadd.f32 %v518, %v556
        %558 = vmatmul.bf16.gmra.mxu0 %v537
        %v559 = vpop.f32.mrf.mxu0
        %v560 = vadd.f32 %v518, %v559
        %v561 = vpop.f32.mrf.mxu0
        %v562 = vadd.f32 %v518, %v561
        %563 = vmatmul.bf16.gmra.mxu0 %v540
        %v564 = vpop.f32.mrf.mxu0
        %v565 = vadd.f32 %v518, %v564
        %v566 = vpop.f32.mrf.mxu0
        %v567 = vadd.f32 %v518, %v566
        %568 = vmatmul.bf16.gmra.mxu0 %v543
        %v569 = vpop.f32.mrf.mxu0
        %v570 = vadd.f32 %v518, %v569
        %v571 = vpop.f32.mrf.mxu0
        %v572 = vadd.f32 %v518, %v571
        %573 = vdwg.mxu0
        %574 = vadd.xlane.f32.xlu0 %v555
        %v575 = vpop.xlane.xlu0 %574
        %576 = vadd.xlane.f32.xlu0 %v557
        %v577 = vpop.xlane.xlu0 %576
        %578 = vadd.xlane.f32.xlu0 %v560
        %v579 = vpop.xlane.xlu0 %578
        %580 = vadd.xlane.f32.xlu0 %v562
        %v581 = vpop.xlane.xlu0 %580
        %582 = vadd.xlane.f32.xlu0 %v565
        %v583 = vpop.xlane.xlu0 %582
        %584 = vadd.xlane.f32.xlu0 %v567
        %v585 = vpop.xlane.xlu0 %584
        %586 = vadd.xlane.f32.xlu0 %v570
        %v587 = vpop.xlane.xlu0 %586
        %588 = vadd.xlane.f32.xlu0 %v572
        %v589 = vpop.xlane.xlu0 %588
        %v590 = vrcp.pop 128.0
        %v591 = vmul.f32 128.0, %v590
        %v592 = vsub.f32 1.0, %v591
        %v593 = vmul.f32 %v590, %v592
        %v594 = vadd.f32 %v590, %v593
        %vm595 = vweird.f32 %v590
        %v596 = vsel %vm595, %v590, %v594
        %v597 = vmul.f32 %v575, %v596
        %v598 = vmul.f32 %v577, %v596
        %v599 = vmul.f32 %v579, %v596
        %v600 = vmul.f32 %v581, %v596
        %v601 = vmul.f32 %v583, %v596
        %v602 = vmul.f32 %v585, %v596
        %v603 = vmul.f32 %v587, %v596
        %v604 = vmul.f32 %v589, %v596
        %v605 = vmul.f32 %v555, %v555
        %v606 = vmul.f32 %v557, %v557
        %v607 = vmul.f32 %v560, %v560
        %v608 = vmul.f32 %v562, %v562
        %v609 = vmul.f32 %v565, %v565
        %v610 = vmul.f32 %v567, %v567
        %v611 = vmul.f32 %v570, %v570
        %v612 = vmul.f32 %v572, %v572
        %613 = vadd.xlane.f32.xlu0 %v605
        %v614 = vpop.xlane.xlu0 %613
        %615 = vadd.xlane.f32.xlu0 %v606
        %v616 = vpop.xlane.xlu0 %615
        %617 = vadd.xlane.f32.xlu0 %v607
        %v618 = vpop.xlane.xlu0 %617
        %619 = vadd.xlane.f32.xlu0 %v608
        %v620 = vpop.xlane.xlu0 %619
        %621 = vadd.xlane.f32.xlu0 %v609
        %v622 = vpop.xlane.xlu0 %621
        %623 = vadd.xlane.f32.xlu0 %v610
        %v624 = vpop.xlane.xlu0 %623
        %625 = vadd.xlane.f32.xlu0 %v611
        %v626 = vpop.xlane.xlu0 %625
        %627 = vadd.xlane.f32.xlu0 %v612
        %v628 = vpop.xlane.xlu0 %627
        %v629 = vmul.f32 %v614, %v596
        %v630 = vmul.f32 %v616, %v596
        %v631 = vmul.f32 %v618, %v596
        %v632 = vmul.f32 %v620, %v596
        %v633 = vmul.f32 %v622, %v596
        %v634 = vmul.f32 %v624, %v596
        %v635 = vmul.f32 %v626, %v596
        %v636 = vmul.f32 %v628, %v596
        %v637 = vmul.f32 %v597, %v597
        %v638 = vmul.f32 %v598, %v598
        %v639 = vmul.f32 %v599, %v599
        %v640 = vmul.f32 %v600, %v600
        %v641 = vmul.f32 %v601, %v601
        %v642 = vmul.f32 %v602, %v602
        %v643 = vmul.f32 %v603, %v603
        %v644 = vmul.f32 %v604, %v604
        %v645 = vsub.f32 %v629, %v637
        %v646 = vsub.f32 %v630, %v638
        %v647 = vsub.f32 %v631, %v639
        %v648 = vsub.f32 %v632, %v640
        %v649 = vsub.f32 %v633, %v641
        %v650 = vsub.f32 %v634, %v642
        %v651 = vsub.f32 %v635, %v643
        %v652 = vsub.f32 %v636, %v644
        %v653 = vmax.f32 %v645, 0.0
        %v654 = vmax.f32 %v646, 0.0
        %v655 = vmax.f32 %v647, 0.0
        %v656 = vmax.f32 %v648, 0.0
        %v657 = vmax.f32 %v649, 0.0
        %v658 = vmax.f32 %v650, 0.0
        %v659 = vmax.f32 %v651, 0.0
        %v660 = vmax.f32 %v652, 0.0
        %v661 = vsub.f32 %v555, %v597
        %v662 = vsub.f32 %v557, %v598
        %v663 = vsub.f32 %v560, %v599
        %v664 = vsub.f32 %v562, %v600
        %v665 = vsub.f32 %v565, %v601
        %v666 = vsub.f32 %v567, %v602
        %v667 = vsub.f32 %v570, %v603
        %v668 = vsub.f32 %v572, %v604
        %v669 = vadd.f32 %v653, 1e-06
        %v670 = vadd.f32 %v654, 1e-06
        %v671 = vadd.f32 %v655, 1e-06
        %v672 = vadd.f32 %v656, 1e-06
        %v673 = vadd.f32 %v657, 1e-06
        %v674 = vadd.f32 %v658, 1e-06
        %v675 = vadd.f32 %v659, 1e-06
        %v676 = vadd.f32 %v660, 1e-06
        %v677 = vrsqrt.pop %v669
        %v678 = vmul.f32 %v677, %v669
        %v679 = vmul.f32 %v678, %v677
        %v680 = vmul.f32 0.5, %v679
        %v681 = vsub.f32 1.5, %v680
        %v682 = vmul.f32 %v677, %v681
        %vm683 = vweird.f32 %v669
        %vm684 = vweird.f32 %v677
        %vm685 = vmor %vm683, %vm684
        %v686 = vsel %vm685, %v677, %v682
        %v687 = vrsqrt.pop %v670
        %v688 = vmul.f32 %v687, %v670
        %v689 = vmul.f32 %v688, %v687
        %v690 = vmul.f32 0.5, %v689
        %v691 = vsub.f32 1.5, %v690
        %v692 = vmul.f32 %v687, %v691
        %vm693 = vweird.f32 %v670
        %vm694 = vweird.f32 %v687
        %vm695 = vmor %vm693, %vm694
        %v696 = vsel %vm695, %v687, %v692
        %v697 = vrsqrt.pop %v671
        %v698 = vmul.f32 %v697, %v671
        %v699 = vmul.f32 %v698, %v697
        %v700 = vmul.f32 0.5, %v699
        %v701 = vsub.f32 1.5, %v700
        %v702 = vmul.f32 %v697, %v701
        %vm703 = vweird.f32 %v671
        %vm704 = vweird.f32 %v697
        %vm705 = vmor %vm703, %vm704
        %v706 = vsel %vm705, %v697, %v702
        %v707 = vrsqrt.pop %v672
        %v708 = vmul.f32 %v707, %v672
        %v709 = vmul.f32 %v708, %v707
        %v710 = vmul.f32 0.5, %v709
        %v711 = vsub.f32 1.5, %v710
        %v712 = vmul.f32 %v707, %v711
        %vm713 = vweird.f32 %v672
        %vm714 = vweird.f32 %v707
        %vm715 = vmor %vm713, %vm714
        %v716 = vsel %vm715, %v707, %v712
        %v717 = vrsqrt.pop %v673
        %v718 = vmul.f32 %v717, %v673
        %v719 = vmul.f32 %v718, %v717
        %v720 = vmul.f32 0.5, %v719
        %v721 = vsub.f32 1.5, %v720
        %v722 = vmul.f32 %v717, %v721
        %vm723 = vweird.f32 %v673
        %vm724 = vweird.f32 %v717
        %vm725 = vmor %vm723, %vm724
        %v726 = vsel %vm725, %v717, %v722
        %v727 = vrsqrt.pop %v674
        %v728 = vmul.f32 %v727, %v674
        %v729 = vmul.f32 %v728, %v727
        %v730 = vmul.f32 0.5, %v729
        %v731 = vsub.f32 1.5, %v730
        %v732 = vmul.f32 %v727, %v731
        %vm733 = vweird.f32 %v674
        %vm734 = vweird.f32 %v727
        %vm735 = vmor %vm733, %vm734
        %v736 = vsel %vm735, %v727, %v732
        %v737 = vrsqrt.pop %v675
        %v738 = vmul.f32 %v737, %v675
        %v739 = vmul.f32 %v738, %v737
        %v740 = vmul.f32 0.5, %v739
        %v741 = vsub.f32 1.5, %v740
        %v742 = vmul.f32 %v737, %v741
        %vm743 = vweird.f32 %v675
        %vm744 = vweird.f32 %v737
        %vm745 = vmor %vm743, %vm744
        %v746 = vsel %vm745, %v737, %v742
        %v747 = vrsqrt.pop %v676
        %v748 = vmul.f32 %v747, %v676
        %v749 = vmul.f32 %v748, %v747
        %v750 = vmul.f32 0.5, %v749
        %v751 = vsub.f32 1.5, %v750
        %v752 = vmul.f32 %v747, %v751
        %vm753 = vweird.f32 %v676
        %vm754 = vweird.f32 %v747
        %vm755 = vmor %vm753, %vm754
        %v756 = vsel %vm755, %v747, %v752
        %v757 = vmul.f32 %v661, %v686
        %v758 = vmul.f32 %v662, %v696
        %v759 = vmul.f32 %v663, %v706
        %v760 = vmul.f32 %v664, %v716
        %v761 = vmul.f32 %v665, %v726
        %v762 = vmul.f32 %v666, %v736
        %v763 = vmul.f32 %v667, %v746
        %v764 = vmul.f32 %v668, %v756
        %v765 = vld [vmem:[%s6] sm:$0x1]
        %v767 = vperm.slane %v765, 0
        %v769 = vmul.f32 %v757, %v767
        %v770 = vmul.f32 %v758, %v767
        %v771 = vmul.f32 %v759, %v767
        %v772 = vmul.f32 %v760, %v767
        %v773 = vmul.f32 %v761, %v767
        %v774 = vmul.f32 %v762, %v767
        %v775 = vmul.f32 %v763, %v767
        %v776 = vmul.f32 %v764, %v767
        %v777 = vld [vmem:[%s7] sm:$0x1]
        %v779 = vperm.slane %v777, 0
        %v781 = vadd.f32 %v769, %v779
        %v782 = vadd.f32 %v770, %v779
        %v783 = vadd.f32 %v771, %v779
        %v784 = vadd.f32 %v772, %v779
        %v785 = vadd.f32 %v773, %v779
        %v786 = vadd.f32 %v774, %v779
        %v787 = vadd.f32 %v775, %v779
        %v788 = vadd.f32 %v776, %v779
        %v789 = vxor.u32 %v781, 2147483648
        %v790 = vxor.u32 %v782, 2147483648
        %v791 = vxor.u32 %v783, 2147483648
        %v792 = vxor.u32 %v784, 2147483648
        %v793 = vxor.u32 %v785, 2147483648
        %v794 = vxor.u32 %v786, 2147483648
        %v795 = vxor.u32 %v787, 2147483648
        %v796 = vxor.u32 %v788, 2147483648
        %v797 = vmul.f32 %v789, 1.442695
        %v798 = vpow.pop %v797
        %v799 = vmul.f32 %v790, 1.442695
        %v800 = vpow.pop %v799
        %v801 = vmul.f32 %v791, 1.442695
        %v802 = vpow.pop %v801
        %v803 = vmul.f32 %v792, 1.442695
        %v804 = vpow.pop %v803
        %v805 = vmul.f32 %v793, 1.442695
        %v806 = vpow.pop %v805
        %v807 = vmul.f32 %v794, 1.442695
        %v808 = vpow.pop %v807
        %v809 = vmul.f32 %v795, 1.442695
        %v810 = vpow.pop %v809
        %v811 = vmul.f32 %v796, 1.442695
        %v812 = vpow.pop %v811
        %v813 = vadd.f32 %v798, 1.0
        %v814 = vadd.f32 %v800, 1.0
        %v815 = vadd.f32 %v802, 1.0
        %v816 = vadd.f32 %v804, 1.0
        %v817 = vadd.f32 %v806, 1.0
        %v818 = vadd.f32 %v808, 1.0
        %v819 = vadd.f32 %v810, 1.0
        %v820 = vadd.f32 %v812, 1.0
        %v821 = vrcp.pop %v813
        %v822 = vmul.f32 %v813, %v821
        %v823 = vsub.f32 1.0, %v822
        %v824 = vmul.f32 %v821, %v823
        %v825 = vadd.f32 %v821, %v824
        %vm826 = vweird.f32 %v813
        %vm827 = vweird.f32 %v821
        %vm828 = vmor %vm826, %vm827
        %v829 = vsel %vm828, %v821, %v825
        %v830 = vand.u32 2147483647, %v813
        %vm831 = vcmp.eq.f32.partialorder %v830, 8.507059e+37
        %v832 = vand.u32 %v813, 2147483648
        %v833 = vor.u32 1.1754944e-38, %v832
        %v834 = vsel %vm831, %v833, %v829
        %v835 = vmul.f32 1.0, %v834
        %v836 = vrcp.pop %v814
        %v837 = vmul.f32 %v814, %v836
        %v838 = vsub.f32 1.0, %v837
        %v839 = vmul.f32 %v836, %v838
        %v840 = vadd.f32 %v836, %v839
        %vm841 = vweird.f32 %v814
        %vm842 = vweird.f32 %v836
        %vm843 = vmor %vm841, %vm842
        %v844 = vsel %vm843, %v836, %v840
        %v845 = vand.u32 2147483647, %v814
        %vm846 = vcmp.eq.f32.partialorder %v845, 8.507059e+37
        %v847 = vand.u32 %v814, 2147483648
        %v848 = vor.u32 1.1754944e-38, %v847
        %v849 = vsel %vm846, %v848, %v844
        %v850 = vmul.f32 1.0, %v849
        %v851 = vrcp.pop %v815
        %v852 = vmul.f32 %v815, %v851
        %v853 = vsub.f32 1.0, %v852
        %v854 = vmul.f32 %v851, %v853
        %v855 = vadd.f32 %v851, %v854
        %vm856 = vweird.f32 %v815
        %vm857 = vweird.f32 %v851
        %vm858 = vmor %vm856, %vm857
        %v859 = vsel %vm858, %v851, %v855
        %v860 = vand.u32 2147483647, %v815
        %vm861 = vcmp.eq.f32.partialorder %v860, 8.507059e+37
        %v862 = vand.u32 %v815, 2147483648
        %v863 = vor.u32 1.1754944e-38, %v862
        %v864 = vsel %vm861, %v863, %v859
        %v865 = vmul.f32 1.0, %v864
        %v866 = vrcp.pop %v816
        %v867 = vmul.f32 %v816, %v866
        %v868 = vsub.f32 1.0, %v867
        %v869 = vmul.f32 %v866, %v868
        %v870 = vadd.f32 %v866, %v869
        %vm871 = vweird.f32 %v816
        %vm872 = vweird.f32 %v866
        %vm873 = vmor %vm871, %vm872
        %v874 = vsel %vm873, %v866, %v870
        %v875 = vand.u32 2147483647, %v816
        %vm876 = vcmp.eq.f32.partialorder %v875, 8.507059e+37
        %v877 = vand.u32 %v816, 2147483648
        %v878 = vor.u32 1.1754944e-38, %v877
        %v879 = vsel %vm876, %v878, %v874
        %v880 = vmul.f32 1.0, %v879
        %v881 = vrcp.pop %v817
        %v882 = vmul.f32 %v817, %v881
        %v883 = vsub.f32 1.0, %v882
        %v884 = vmul.f32 %v881, %v883
        %v885 = vadd.f32 %v881, %v884
        %vm886 = vweird.f32 %v817
        %vm887 = vweird.f32 %v881
        %vm888 = vmor %vm886, %vm887
        %v889 = vsel %vm888, %v881, %v885
        %v890 = vand.u32 2147483647, %v817
        %vm891 = vcmp.eq.f32.partialorder %v890, 8.507059e+37
        %v892 = vand.u32 %v817, 2147483648
        %v893 = vor.u32 1.1754944e-38, %v892
        %v894 = vsel %vm891, %v893, %v889
        %v895 = vmul.f32 1.0, %v894
        %v896 = vrcp.pop %v818
        %v897 = vmul.f32 %v818, %v896
        %v898 = vsub.f32 1.0, %v897
        %v899 = vmul.f32 %v896, %v898
        %v900 = vadd.f32 %v896, %v899
        %vm901 = vweird.f32 %v818
        %vm902 = vweird.f32 %v896
        %vm903 = vmor %vm901, %vm902
        %v904 = vsel %vm903, %v896, %v900
        %v905 = vand.u32 2147483647, %v818
        %vm906 = vcmp.eq.f32.partialorder %v905, 8.507059e+37
        %v907 = vand.u32 %v818, 2147483648
        %v908 = vor.u32 1.1754944e-38, %v907
        %v909 = vsel %vm906, %v908, %v904
        %v910 = vmul.f32 1.0, %v909
        %v911 = vrcp.pop %v819
        %v912 = vmul.f32 %v819, %v911
        %v913 = vsub.f32 1.0, %v912
        %v914 = vmul.f32 %v911, %v913
        %v915 = vadd.f32 %v911, %v914
        %vm916 = vweird.f32 %v819
        %vm917 = vweird.f32 %v911
        %vm918 = vmor %vm916, %vm917
        %v919 = vsel %vm918, %v911, %v915
        %v920 = vand.u32 2147483647, %v819
        %vm921 = vcmp.eq.f32.partialorder %v920, 8.507059e+37
        %v922 = vand.u32 %v819, 2147483648
        %v923 = vor.u32 1.1754944e-38, %v922
        %v924 = vsel %vm921, %v923, %v919
        %v925 = vmul.f32 1.0, %v924
        %v926 = vrcp.pop %v820
        %v927 = vmul.f32 %v820, %v926
        %v928 = vsub.f32 1.0, %v927
        %v929 = vmul.f32 %v926, %v928
        %v930 = vadd.f32 %v926, %v929
        %vm931 = vweird.f32 %v820
        %vm932 = vweird.f32 %v926
        %vm933 = vmor %vm931, %vm932
        %v934 = vsel %vm933, %v926, %v930
        %v935 = vand.u32 2147483647, %v820
        %vm936 = vcmp.eq.f32.partialorder %v935, 8.507059e+37
        %v937 = vand.u32 %v820, 2147483648
        %v938 = vor.u32 1.1754944e-38, %v937
        %v939 = vsel %vm936, %v938, %v934
        %v940 = vmul.f32 1.0, %v939
        %v941 = vmul.f32 %v835, %v351
        %v942 = vmul.f32 %v850, %v352
        %v943 = vmul.f32 %v865, %v353
        %v944 = vmul.f32 %v880, %v354
        %v945 = vmul.f32 %v895, %v355
        %v946 = vmul.f32 %v910, %v356
        %v947 = vmul.f32 %v925, %v357
        %v948 = vmul.f32 %v940, %v358
        %949 = vst [vmem:[%s341] sm:$0xff] %v941
        %950 = vst [vmem:[%s341 + $0x8] sm:$0xff] %v942
        %951 = vst [vmem:[%s341 + $0x10] sm:$0xff] %v943
        %952 = vst [vmem:[%s341 + $0x18] sm:$0xff] %v944
        %953 = vst [vmem:[%s341 + $0x20] sm:$0xff] %v945
        %954 = vst [vmem:[%s341 + $0x28] sm:$0xff] %v946
        %955 = vst [vmem:[%s341 + $0x30] sm:$0xff] %v947
        %956 = vst [vmem:[%s341 + $0x38] sm:$0xff] %v948
        %s957 = sand.u32 %s211, 1
        %s958 = scalar_lea.sflag [#allocation4], %s957
        %s959 = sand.u32 %s211, 1
        %s960 = smul.addr %s959, 64
        %s961 = scalar_lea.vmem [#allocation5], %s960
        // Predicated region
        $region57: #{tpu_custom_call.1} parent=51 // pred_check
          %p962 = pneg %p221
        $region58: #{tpu_custom_call.1} parent=51 // pred_check_branch
          %964 = sbr.rel (%p962) target = $region60
        $region59: #{tpu_custom_call.1} parent=51 // pred_region
          %s965 = smul.u32 8, %s25
          %967 = vsyncadd %s958, 0
          %s968 = smul.addr %s965, 8
          %s969 = scalar_lea.hbm %s8, %s968
          %s970 = sshll.u32 %s961, 4
          %s971 = int_to_ptr.vmem [resolvable:$true] %s970
          %s972 = sshll.u32 %s969, 4
          %s973 = int_to_ptr.hbm [resolvable:$true] %s972
          %978 = dma.vmem_to_hbm [thread:$0]  %s971, 1024, %s973, %s958, 128, 128, 8
        $region60: #{tpu_custom_call.1} parent=51 // pred_fallthru
          _
      $region52: #{tpu_custom_call.1} parent=5 // pred_fallthru
        _
      %p979 = scmp.le.s32.totalorder 2, %s20
      // Predicated region
      $region61: #{tpu_custom_call.1} parent=5 // pred_check
        %p980 = pneg %p979
      $region62: #{tpu_custom_call.1} parent=5 // pred_check_branch
        %982 = sbr.rel (%p980) target = $region64
      $region63: #{tpu_custom_call.1} parent=5 // pred_region
        %s983 = ssub.s32 %s20, 2
        // Predicated region
        $region65: #{tpu_custom_call.1} parent=63 // pred_check
          %p984 = pneg %p227
        $region66: #{tpu_custom_call.1} parent=63 // pred_check_branch
          %986 = sbr.rel (%p984) target = $region68
        $region67: #{tpu_custom_call.1} parent=63 // pred_region
          %s987 = sand.u32 %s212, 1
          %s988 = scalar_lea.sflag [#allocation4], %s987
          %s989 = sand.u32 %s212, 1
          %s990 = smul.addr %s989, 64
          %s991 = scalar_lea.vmem [#allocation5], %s990
          %993 = dma.done %s988, 1024
        $region68: #{tpu_custom_call.1} parent=63 // pred_fallthru
          _
      $region64: #{tpu_custom_call.1} parent=5 // pred_fallthru
        _
    $region6: #{tpu_custom_call.1} parent=1 // loop_footer
      %s24 = sadd.s32 1, %s20
    $region7: #{tpu_custom_call.1} parent=1 // loop_footer_branch
      %19 = sbr.rel target = $region3
    $region8: #{tpu_custom_call.1} parent=1 // loop_exit
      _
    %994 = vsyncpa [#allocation3], 1
    %s995 = scalar_lea.sflag [#allocation3], 1
    %996 = vsyncpa %s995, 1
    %997 = vsyncpa [#allocation4], 1
    %s998 = scalar_lea.sflag [#allocation4], 1
    %999 = vsyncpa %s998, 1

</llo_original>
